<compile_context>
chip_gen: v7x
topology: tpu7x:2x2x1
jax: 0.10.0
libtpu: 0.0.40
codegen_flags: <defaults>
</compile_context>

<pallas_src>
import jax
import jax.numpy as jnp
from jax.experimental import pallas as pl
from jax.experimental.pallas import tpu as pltpu

K = 3            # depthwise kernel size of the wrapped fn
C_BLK = 128      # channels per grid step (full 128-lane vregs at real widths)


def residual_block_kernel(x_ref, w_ref, b_ref, scale_ref, shift_ref, o_ref, xpad):
    # x_ref, o_ref : (H, W, Cb)     one image, one channel block (C on lanes)
    # w_ref        : (K*K, Cb)      depthwise taps as lane vectors
    # b_ref, scale_ref, shift_ref : (1, Cb)
    # xpad         : (H+2, W+2, Cb) f32 VMEM scratch providing the zero halo
    H, W, _ = o_ref.shape

    # Zero halo + stage the block (cheap VMEM memset, hidden under the DMAs).
    xpad[...] = jnp.zeros_like(xpad)
    x = x_ref[...].astype(jnp.float32)
    xpad[1:H + 1, 1:W + 1, :] = x

    # 3x3 depthwise conv as 9 shifted broadcast-FMAs (pure VPU, no MXU needed).
    acc = jnp.zeros((H, W, x.shape[-1]), jnp.float32)
    for di in range(K):
        for dj in range(K):
            w_tap = w_ref[di * K + dj][None, None, :]
            acc = acc + w_tap * xpad[di:di + H, dj:dj + W, :]
    acc = acc + b_ref[0][None, None, :]

    # TODO(synk): PyTorch's default nn.GELU is the exact erf form; we use the
    # tanh approximation (guaranteed EUP lowering).  Difference is ~1e-3 rel.
    y = jax.nn.gelu(acc, approximate=True)
    y = y * scale_ref[0][None, None, :] + shift_ref[0][None, None, :]

    # Residual: fn(x) + x  (residual taken from the already-loaded block).
    o_ref[...] = (y + x).astype(o_ref.dtype)


def residual_forward(x, w, b, gamma, beta, running_mean, running_var, eps=1e-5):
    """Pallas implementation of Residual(fn)(x), fn = depthwise conv + GELU + BN.

    x: (N, C, H, W) NCHW (PyTorch layout); internally computed channel-last.
    """
    N, C, H, W = x.shape
    cb = min(C_BLK, C)
    assert C % cb == 0, "C must be divisible by the channel block size"

    # Channel-last, lane-dense working layout.
    x_nhwc = jnp.transpose(x, (0, 2, 3, 1))            # (N, H, W, C)

    # Fold eval-mode BatchNorm into per-channel scale/shift.
    scale = gamma / jnp.sqrt(running_var + eps)
    shift = beta - running_mean * scale

    # Depthwise weights as (K*K, C) lane vectors; bias/scale/shift as (1, C).
    w_taps = jnp.transpose(w.reshape(C, K * K), (1, 0))  # (K*K, C)
    b_row = b.reshape(1, C)
    scale_row = scale.reshape(1, C)
    shift_row = shift.reshape(1, C)

    chan_vec = lambda n, c: (0, c)

    out_nhwc = pl.pallas_call(
        residual_block_kernel,
        out_shape=jax.ShapeDtypeStruct((N, H, W, C), x.dtype),
        grid=(N, C // cb),
        in_specs=[
            pl.BlockSpec((None, H, W, cb), lambda n, c: (n, 0, 0, c)),  # x block
            pl.BlockSpec((K * K, cb), chan_vec),                        # weights
            pl.BlockSpec((1, cb), chan_vec),                            # bias
            pl.BlockSpec((1, cb), chan_vec),                            # BN scale
            pl.BlockSpec((1, cb), chan_vec),                            # BN shift
        ],
        out_specs=pl.BlockSpec((None, H, W, cb), lambda n, c: (n, 0, 0, c)),
        scratch_shapes=[pltpu.VMEM((H + 2, W + 2, cb), jnp.float32)],
        compiler_params=pltpu.CompilerParams(
            dimension_semantics=("parallel", "parallel"),
            vmem_limit_bytes=32 * 1024 * 1024),
    )(x_nhwc, w_taps, b_row, scale_row, shift_row)

    return jnp.transpose(out_nhwc, (0, 3, 1, 2))        # back to NCHW


def residual_reference(x, w, b, gamma, beta, running_mean, running_var, eps=1e-5):
    """Pure-JAX reference for fn(x) + x (same tanh-GELU as the kernel)."""
    N, C, H, W = x.shape
    conv = jax.lax.conv_general_dilated(
        x, w.reshape(C, 1, K, K), window_strides=(1, 1), padding="SAME",
        feature_group_count=C, dimension_numbers=("NCHW", "OIHW", "NCHW"))
    y = jax.nn.gelu(conv + b[None, :, None, None], approximate=True)
    scale = gamma / jnp.sqrt(running_var + eps)
    shift = beta - running_mean * scale
    y = y * scale[None, :, None, None] + shift[None, :, None, None]
    return y + x


if __name__ == "__main__":
    N, C, H, W = 2, 4, 16, 16

    key = jax.random.PRNGKey(0)
    kx, kw, kb, kg, kbeta, km, kv = jax.random.split(key, 7)

    x = jax.random.normal(kx, (N, C, H, W), dtype=jnp.float32)

    # Deterministic synthetic parameters for the wrapped fn.
    w = jax.random.normal(kw, (C, K, K), dtype=jnp.float32) * 0.1   # depthwise weight
    b = jax.random.normal(kb, (C,), dtype=jnp.float32) * 0.1        # conv bias
    gamma = 1.0 + 0.1 * jax.random.normal(kg, (C,), dtype=jnp.float32)
    beta = 0.1 * jax.random.normal(kbeta, (C,), dtype=jnp.float32)
    running_mean = 0.1 * jax.random.normal(km, (C,), dtype=jnp.float32)
    running_var = 1.0 + 0.1 * jax.random.uniform(kv, (C,), dtype=jnp.float32)

    out = residual_forward(x, w, b, gamma, beta, running_mean, running_var)
    out = jax.block_until_ready(out)

    ref = residual_reference(x, w, b, gamma, beta, running_mean, running_var)
    assert out.shape == (N, C, H, W)
    assert jnp.allclose(out, ref, rtol=1e-4, atol=1e-4), float(jnp.max(jnp.abs(out - ref)))

    print("KERNEL_OK")
</pallas_src>

<mosaic_0001>
module attributes {stable_mosaic.version = 11 : i64} {
  func.func @residual_block_kernel(%arg0: i32, %arg1: i32, %arg2: memref<1x16x16x4xf32, #tpu.memory_space<vmem>>, %arg3: memref<9x4xf32, #tpu.memory_space<vmem>>, %arg4: memref<1x4xf32, #tpu.memory_space<vmem>>, %arg5: memref<1x4xf32, #tpu.memory_space<vmem>>, %arg6: memref<1x4xf32, #tpu.memory_space<vmem>>, %arg7: memref<1x16x16x4xf32, #tpu.memory_space<vmem>>, %arg8: memref<18x18x4xf32, #tpu.memory_space<vmem>>) attributes {dimension_semantics = [#tpu.dimension_semantics<parallel>, #tpu.dimension_semantics<parallel>], iteration_bounds = array<i64: 2, 1>, scalar_prefetch = 0 : i64, scratch_operands = 1 : i64, tpu.core_type = #tpu.core_type<tc>, window_params = [{transform_indices = @transform_0, window_bounds = array<i64: 1, 16, 16, 4>}, {transform_indices = @transform_1, window_bounds = array<i64: 9, 4>}, {transform_indices = @transform_2, window_bounds = array<i64: 1, 4>}, {transform_indices = @transform_3, window_bounds = array<i64: 1, 4>}, {transform_indices = @transform_4, window_bounds = array<i64: 1, 4>}, {transform_indices = @transform_5, window_bounds = array<i64: 1, 16, 16, 4>}]} {
    %cst = arith.constant 0.000000e+00 : f32
    %0 = vector.broadcast %cst : f32 to vector<18x18x4xf32>
    %c0 = arith.constant 0 : index
    %c0_0 = arith.constant 0 : index
    %c0_1 = arith.constant 0 : index
    %1 = vector.load %arg8[%c0, %c0_0, %c0_1] : memref<18x18x4xf32, #tpu.memory_space<vmem>>, vector<18x18x4xf32>
    tpu.vector_store %arg8[%c0, %c0_0, %c0_1], %0 {strides = array<i32>} : memref<18x18x4xf32, #tpu.memory_space<vmem>>, vector<18x18x4xf32>,
    %c0_2 = arith.constant 0 : index
    %c0_3 = arith.constant 0 : index
    %c0_4 = arith.constant 0 : index
    %c0_5 = arith.constant 0 : index
    %2 = vector.load %arg2[%c0_2, %c0_3, %c0_4, %c0_5] : memref<1x16x16x4xf32, #tpu.memory_space<vmem>>, vector<1x16x16x4xf32>
    %3 = vector.shape_cast %2 : vector<1x16x16x4xf32> to vector<16x16x4xf32>
    %c1 = arith.constant 1 : index
    %c1_6 = arith.constant 1 : index
    %c0_7 = arith.constant 0 : index
    %4 = vector.load %arg8[%c1, %c1_6, %c0_7] : memref<18x18x4xf32, #tpu.memory_space<vmem>>, vector<16x16x4xf32>
    tpu.vector_store %arg8[%c1, %c1_6, %c0_7], %3 {strides = array<i32>} : memref<18x18x4xf32, #tpu.memory_space<vmem>>, vector<16x16x4xf32>,
    %cst_8 = arith.constant 0.000000e+00 : f32
    %5 = vector.broadcast %cst_8 : f32 to vector<16x16x4xf32>
    %c0_9 = arith.constant 0 : index
    %c0_10 = arith.constant 0 : index
    %6 = vector.load %arg3[%c0_9, %c0_10] : memref<9x4xf32, #tpu.memory_space<vmem>>, vector<1x4xf32>
    %7 = vector.shape_cast %6 : vector<1x4xf32> to vector<4xf32>
    %8 = vector.shape_cast %7 : vector<4xf32> to vector<1x1x4xf32>
    %c0_11 = arith.constant 0 : index
    %c0_12 = arith.constant 0 : index
    %c0_13 = arith.constant 0 : index
    %9 = vector.load %arg8[%c0_11, %c0_12, %c0_13] : memref<18x18x4xf32, #tpu.memory_space<vmem>>, vector<16x16x4xf32>
    %10 = vector.broadcast %8 : vector<1x1x4xf32> to vector<16x16x4xf32>
    %11 = arith.mulf %10, %9 : vector<16x16x4xf32>
    %12 = arith.addf %5, %11 : vector<16x16x4xf32>
    %c1_14 = arith.constant 1 : index
    %c0_15 = arith.constant 0 : index
    %13 = vector.load %arg3[%c1_14, %c0_15] : memref<9x4xf32, #tpu.memory_space<vmem>>, vector<1x4xf32>
    %14 = vector.shape_cast %13 : vector<1x4xf32> to vector<4xf32>
    %15 = vector.shape_cast %14 : vector<4xf32> to vector<1x1x4xf32>
    %c0_16 = arith.constant 0 : index
    %c1_17 = arith.constant 1 : index
    %c0_18 = arith.constant 0 : index
    %16 = vector.load %arg8[%c0_16, %c1_17, %c0_18] : memref<18x18x4xf32, #tpu.memory_space<vmem>>, vector<16x16x4xf32>
    %17 = vector.broadcast %15 : vector<1x1x4xf32> to vector<16x16x4xf32>
    %18 = arith.mulf %17, %16 : vector<16x16x4xf32>
    %19 = arith.addf %12, %18 : vector<16x16x4xf32>
    %c2 = arith.constant 2 : index
    %c0_19 = arith.constant 0 : index
    %20 = vector.load %arg3[%c2, %c0_19] : memref<9x4xf32, #tpu.memory_space<vmem>>, vector<1x4xf32>
    %21 = vector.shape_cast %20 : vector<1x4xf32> to vector<4xf32>
    %22 = vector.shape_cast %21 : vector<4xf32> to vector<1x1x4xf32>
    %c0_20 = arith.constant 0 : index
    %c2_21 = arith.constant 2 : index
    %c0_22 = arith.constant 0 : index
    %23 = vector.load %arg8[%c0_20, %c2_21, %c0_22] : memref<18x18x4xf32, #tpu.memory_space<vmem>>, vector<16x16x4xf32>
    %24 = vector.broadcast %22 : vector<1x1x4xf32> to vector<16x16x4xf32>
    %25 = arith.mulf %24, %23 : vector<16x16x4xf32>
    %26 = arith.addf %19, %25 : vector<16x16x4xf32>
    %c3 = arith.constant 3 : index
    %c0_23 = arith.constant 0 : index
    %27 = vector.load %arg3[%c3, %c0_23] : memref<9x4xf32, #tpu.memory_space<vmem>>, vector<1x4xf32>
    %28 = vector.shape_cast %27 : vector<1x4xf32> to vector<4xf32>
    %29 = vector.shape_cast %28 : vector<4xf32> to vector<1x1x4xf32>
    %c1_24 = arith.constant 1 : index
    %c0_25 = arith.constant 0 : index
    %c0_26 = arith.constant 0 : index
    %30 = vector.load %arg8[%c1_24, %c0_25, %c0_26] : memref<18x18x4xf32, #tpu.memory_space<vmem>>, vector<16x16x4xf32>
    %31 = vector.broadcast %29 : vector<1x1x4xf32> to vector<16x16x4xf32>
    %32 = arith.mulf %31, %30 : vector<16x16x4xf32>
    %33 = arith.addf %26, %32 : vector<16x16x4xf32>
    %c4 = arith.constant 4 : index
    %c0_27 = arith.constant 0 : index
    %34 = vector.load %arg3[%c4, %c0_27] : memref<9x4xf32, #tpu.memory_space<vmem>>, vector<1x4xf32>
    %35 = vector.shape_cast %34 : vector<1x4xf32> to vector<4xf32>
    %36 = vector.shape_cast %35 : vector<4xf32> to vector<1x1x4xf32>
    %c1_28 = arith.constant 1 : index
    %c1_29 = arith.constant 1 : index
    %c0_30 = arith.constant 0 : index
    %37 = vector.load %arg8[%c1_28, %c1_29, %c0_30] : memref<18x18x4xf32, #tpu.memory_space<vmem>>, vector<16x16x4xf32>
    %38 = vector.broadcast %36 : vector<1x1x4xf32> to vector<16x16x4xf32>
    %39 = arith.mulf %38, %37 : vector<16x16x4xf32>
    %40 = arith.addf %33, %39 : vector<16x16x4xf32>
    %c5 = arith.constant 5 : index
    %c0_31 = arith.constant 0 : index
    %41 = vector.load %arg3[%c5, %c0_31] : memref<9x4xf32, #tpu.memory_space<vmem>>, vector<1x4xf32>
    %42 = vector.shape_cast %41 : vector<1x4xf32> to vector<4xf32>
    %43 = vector.shape_cast %42 : vector<4xf32> to vector<1x1x4xf32>
    %c1_32 = arith.constant 1 : index
    %c2_33 = arith.constant 2 : index
    %c0_34 = arith.constant 0 : index
    %44 = vector.load %arg8[%c1_32, %c2_33, %c0_34] : memref<18x18x4xf32, #tpu.memory_space<vmem>>, vector<16x16x4xf32>
    %45 = vector.broadcast %43 : vector<1x1x4xf32> to vector<16x16x4xf32>
    %46 = arith.mulf %45, %44 : vector<16x16x4xf32>
    %47 = arith.addf %40, %46 : vector<16x16x4xf32>
    %c6 = arith.constant 6 : index
    %c0_35 = arith.constant 0 : index
    %48 = vector.load %arg3[%c6, %c0_35] : memref<9x4xf32, #tpu.memory_space<vmem>>, vector<1x4xf32>
    %49 = vector.shape_cast %48 : vector<1x4xf32> to vector<4xf32>
    %50 = vector.shape_cast %49 : vector<4xf32> to vector<1x1x4xf32>
    %c2_36 = arith.constant 2 : index
    %c0_37 = arith.constant 0 : index
    %c0_38 = arith.constant 0 : index
    %51 = vector.load %arg8[%c2_36, %c0_37, %c0_38] : memref<18x18x4xf32, #tpu.memory_space<vmem>>, vector<16x16x4xf32>
    %52 = vector.broadcast %50 : vector<1x1x4xf32> to vector<16x16x4xf32>
    %53 = arith.mulf %52, %51 : vector<16x16x4xf32>
    %54 = arith.addf %47, %53 : vector<16x16x4xf32>
    %c7 = arith.constant 7 : index
    %c0_39 = arith.constant 0 : index
    %55 = vector.load %arg3[%c7, %c0_39] : memref<9x4xf32, #tpu.memory_space<vmem>>, vector<1x4xf32>
    %56 = vector.shape_cast %55 : vector<1x4xf32> to vector<4xf32>
    %57 = vector.shape_cast %56 : vector<4xf32> to vector<1x1x4xf32>
    %c2_40 = arith.constant 2 : index
    %c1_41 = arith.constant 1 : index
    %c0_42 = arith.constant 0 : index
    %58 = vector.load %arg8[%c2_40, %c1_41, %c0_42] : memref<18x18x4xf32, #tpu.memory_space<vmem>>, vector<16x16x4xf32>
    %59 = vector.broadcast %57 : vector<1x1x4xf32> to vector<16x16x4xf32>
    %60 = arith.mulf %59, %58 : vector<16x16x4xf32>
    %61 = arith.addf %54, %60 : vector<16x16x4xf32>
    %c8 = arith.constant 8 : index
    %c0_43 = arith.constant 0 : index
    %62 = vector.load %arg3[%c8, %c0_43] : memref<9x4xf32, #tpu.memory_space<vmem>>, vector<1x4xf32>
    %63 = vector.shape_cast %62 : vector<1x4xf32> to vector<4xf32>
    %64 = vector.shape_cast %63 : vector<4xf32> to vector<1x1x4xf32>
    %c2_44 = arith.constant 2 : index
    %c2_45 = arith.constant 2 : index
    %c0_46 = arith.constant 0 : index
    %65 = vector.load %arg8[%c2_44, %c2_45, %c0_46] : memref<18x18x4xf32, #tpu.memory_space<vmem>>, vector<16x16x4xf32>
    %66 = vector.broadcast %64 : vector<1x1x4xf32> to vector<16x16x4xf32>
    %67 = arith.mulf %66, %65 : vector<16x16x4xf32>
    %68 = arith.addf %61, %67 : vector<16x16x4xf32>
    %c0_47 = arith.constant 0 : index
    %c0_48 = arith.constant 0 : index
    %69 = vector.load %arg4[%c0_47, %c0_48] : memref<1x4xf32, #tpu.memory_space<vmem>>, vector<1x4xf32>
    %70 = vector.shape_cast %69 : vector<1x4xf32> to vector<4xf32>
    %71 = vector.shape_cast %70 : vector<4xf32> to vector<1x1x4xf32>
    %72 = vector.broadcast %71 : vector<1x1x4xf32> to vector<16x16x4xf32>
    %73 = arith.addf %68, %72 : vector<16x16x4xf32>
    %74 = arith.mulf %73, %73 : vector<16x16x4xf32>
    %75 = arith.mulf %73, %74 : vector<16x16x4xf32>
    %cst_49 = arith.constant 4.471500e-02 : f32
    %76 = vector.broadcast %cst_49 : f32 to vector<16x16x4xf32>
    %77 = arith.mulf %76, %75 : vector<16x16x4xf32>
    %78 = arith.addf %73, %77 : vector<16x16x4xf32>
    %cst_50 = arith.constant 0.797884583 : f32
    %79 = vector.broadcast %cst_50 : f32 to vector<16x16x4xf32>
    %80 = arith.mulf %79, %78 : vector<16x16x4xf32>
    %81 = math.tanh %80 : vector<16x16x4xf32>
    %cst_51 = arith.constant 1.000000e+00 : f32
    %82 = vector.broadcast %cst_51 : f32 to vector<16x16x4xf32>
    %83 = arith.addf %82, %81 : vector<16x16x4xf32>
    %cst_52 = arith.constant 5.000000e-01 : f32
    %84 = vector.broadcast %cst_52 : f32 to vector<16x16x4xf32>
    %85 = arith.mulf %84, %83 : vector<16x16x4xf32>
    %86 = arith.mulf %73, %85 : vector<16x16x4xf32>
    %c0_53 = arith.constant 0 : index
    %c0_54 = arith.constant 0 : index
    %87 = vector.load %arg5[%c0_53, %c0_54] : memref<1x4xf32, #tpu.memory_space<vmem>>, vector<1x4xf32>
    %88 = vector.shape_cast %87 : vector<1x4xf32> to vector<4xf32>
    %89 = vector.shape_cast %88 : vector<4xf32> to vector<1x1x4xf32>
    %90 = vector.broadcast %89 : vector<1x1x4xf32> to vector<16x16x4xf32>
    %91 = arith.mulf %86, %90 : vector<16x16x4xf32>
    %c0_55 = arith.constant 0 : index
    %c0_56 = arith.constant 0 : index
    %92 = vector.load %arg6[%c0_55, %c0_56] : memref<1x4xf32, #tpu.memory_space<vmem>>, vector<1x4xf32>
    %93 = vector.shape_cast %92 : vector<1x4xf32> to vector<4xf32>
    %94 = vector.shape_cast %93 : vector<4xf32> to vector<1x1x4xf32>
    %95 = vector.broadcast %94 : vector<1x1x4xf32> to vector<16x16x4xf32>
    %96 = arith.addf %91, %95 : vector<16x16x4xf32>
    %97 = arith.addf %96, %3 : vector<16x16x4xf32>
    %c0_57 = arith.constant 0 : index
    %c0_58 = arith.constant 0 : index
    %c0_59 = arith.constant 0 : index
    %c0_60 = arith.constant 0 : index
    %98 = vector.load %arg7[%c0_57, %c0_58, %c0_59, %c0_60] : memref<1x16x16x4xf32, #tpu.memory_space<vmem>>, vector<1x16x16x4xf32>
    %99 = vector.shape_cast %98 : vector<1x16x16x4xf32> to vector<16x16x4xf32>
    %100 = vector.shape_cast %97 : vector<16x16x4xf32> to vector<1x16x16x4xf32>
    tpu.vector_store %arg7[%c0_57, %c0_58, %c0_59, %c0_60], %100 {strides = array<i32>} : memref<1x16x16x4xf32, #tpu.memory_space<vmem>>, vector<1x16x16x4xf32>,
    return
  }
  func.func @transform_0(%arg0: i32, %arg1: i32) -> (i32, i32, i32, i32) {
    %c0_i32 = arith.constant 0 : i32
    %c0_i32_0 = arith.constant 0 : i32
    %c0_i32_1 = arith.constant 0 : i32
    return %arg0, %c0_i32, %c0_i32_0, %arg1 : i32, i32, i32, i32
  }
  func.func @transform_1(%arg0: i32, %arg1: i32) -> (i32, i32) {
    %c0_i32 = arith.constant 0 : i32
    %c0_i32_0 = arith.constant 0 : i32
    return %c0_i32, %arg1 : i32, i32
  }
  func.func @transform_2(%arg0: i32, %arg1: i32) -> (i32, i32) {
    %c0_i32 = arith.constant 0 : i32
    %c0_i32_0 = arith.constant 0 : i32
    return %c0_i32, %arg1 : i32, i32
  }
  func.func @transform_3(%arg0: i32, %arg1: i32) -> (i32, i32) {
    %c0_i32 = arith.constant 0 : i32
    %c0_i32_0 = arith.constant 0 : i32
    return %c0_i32, %arg1 : i32, i32
  }
  func.func @transform_4(%arg0: i32, %arg1: i32) -> (i32, i32) {
    %c0_i32 = arith.constant 0 : i32
    %c0_i32_0 = arith.constant 0 : i32
    return %c0_i32, %arg1 : i32, i32
  }
  func.func @transform_5(%arg0: i32, %arg1: i32) -> (i32, i32, i32, i32) {
    %c0_i32 = arith.constant 0 : i32
    %c0_i32_0 = arith.constant 0 : i32
    %c0_i32_1 = arith.constant 0 : i32
    return %arg0, %c0_i32, %c0_i32_0, %arg1 : i32, i32, i32, i32
  }
}

</mosaic_0001>

<llo_original>
// kernel: tpu_custom_call.1
$region0: #{tpu_custom_call.1}
  #allocation0 [shape = 'u32[]', space=smem, size = 0x4, offset = 0x4, fixed_abs, tag = 'smem constant byte address 0x4 - core index']
  #allocation1 [shape = 'u32[144,128]{1,0:T(1,128)}', space=vmem, size = 0x12000, scoped, tag = 'internal scratch']
  #allocation2 [shape = 'f32[18,18,4]{2,1,0:T(8,128)}', space=vmem, size = 0x36000, scoped, tag = 'scratch operand']
  %s0 = inlined_call_operand.vmem [shape: f32[2,16,16,4], index: 0, kind: input, shape index: {}]
  %s1 = inlined_call_operand.vmem [shape: f32[9,4], index: 1, kind: input, shape index: {}]
  %s2 = inlined_call_operand.vmem [shape: f32[1,4], index: 2, kind: input, shape index: {}]
  %s3 = inlined_call_operand.vmem [shape: f32[1,4], index: 3, kind: input, shape index: {}]
  %s4 = inlined_call_operand.vmem [shape: f32[1,4], index: 4, kind: input, shape index: {}]
  %s5 = inlined_call_operand.vmem [shape: f32[2,16,16,4], index: 5, kind: output, shape index: {}]
  %s6 = sld [smem:[#allocation0]]
  $region53: #{tpu_custom_call.1} parent=0
    _
  %s8 = ssub.s32 1, %s6
  %s9 = scalar_select 0, %s8, %s6
  loop: start=0, step=1, limit=4
  $region2: #{tpu_custom_call.1} parent=0 // loop_pre_header
    _
  $region3: #{tpu_custom_call.1} parent=0 // loop_header
    %s11 = sphi 0, %s15
    %p12 = scmp.ge.s32.totalorder %s11, 4
    %s18 = sphi 0, %s30
    %s19 = sphi 0, %s26
    %s20 = sphi 0, %s18
    %s21 = sphi 0, %s19
    %s22 = sphi 0, %s20
    %s23 = sphi 0, %s21
    %s35 = sphi 0, %s37
    %s38 = sphi 0, %s35
    %s39 = sphi 0, %s38
    %s55 = sphi 0, %s39
    %s61 = sphi 0, %s63
    %s64 = sphi 0, %s61
    %s65 = sphi 0, %s64
    %s81 = sphi 0, %s65
    %s87 = sphi 0, %s89
    %s90 = sphi 0, %s87
    %s91 = sphi 0, %s90
    %s107 = sphi 0, %s91
    %s113 = sphi 0, %s115
    %s116 = sphi 0, %s113
    %s117 = sphi 0, %s116
    %s133 = sphi 0, %s117
    %s139 = sphi 0, %s141
    %s142 = sphi 0, %s139
    %s143 = sphi 0, %s142
    %s159 = sphi 0, %s143
    %s167 = sphi 0, %s169
    %s170 = sphi 0, %s167
    %s171 = sphi 0, %s170
    %s187 = sphi 0, %s171
  $region4: #{tpu_custom_call.1} parent=0 // loop_header_branch
    %14 = sbr.rel (%p12) target = $region8
  $region5: #{tpu_custom_call.1} parent=0 // loop_body
    %s16 = ssub.s32 %s11, 1
    %s17 = ssub.s32 %s11, 2
    %s24 = sadd.s32 1, %s19
    %p25 = scmp.ge.s32.totalorder %s24, 1
    %s26 = scalar_select %p25, 0, %s24
    %s27 = sadd.s32 1, %s18
    %s28 = scalar_select %p25, %s27, %s18
    %p29 = scmp.ge.s32.totalorder %s28, 2
    %s30 = scalar_select %p29, 0, %s28
    %s31 = ssub.s32 %s18, %s30
    %s32 = ssub.s32 %s19, %s26
    %s33 = sor.u32 %s31, %s32
    %p34 = scmp.eq.s32.totalorder %s33, 0
    %s36 = sadd.s32 %s35, 1
    %s37 = scalar_select %p34, %s35, %s36
    %p40 = pneg %p34
    %p41 = scmp.eq.s32.totalorder %s11, 1
    %p42 = por %p40, %p41
    %p43 = scmp.ne.s32.totalorder %s35, %s38
    %p44 = scmp.eq.s32.totalorder %s11, 0
    %p45 = por %p43, %p44
    %p46 = scmp.ne.s32.totalorder %s35, %s38
    %p47 = scmp.eq.s32.totalorder %s16, 1
    %p48 = por %p46, %p47
    %p49 = scmp.ne.s32.totalorder %s38, %s39
    %p50 = scmp.eq.s32.totalorder %s16, 0
    %p51 = por %p49, %p50
    %p52 = scmp.ne.s32.totalorder %s38, %s39
    %p53 = scmp.eq.s32.totalorder %s17, 1
    %p54 = por %p52, %p53
    %p56 = scmp.ne.s32.totalorder %s39, %s55
    %p57 = scmp.eq.s32.totalorder %s17, 0
    %p58 = por %p56, %p57
    %s59 = ssub.s32 %s19, %s26
    %p60 = scmp.eq.s32.totalorder %s59, 0
    %s62 = sadd.s32 %s61, 1
    %s63 = scalar_select %p60, %s61, %s62
    %p66 = pneg %p60
    %p67 = scmp.eq.s32.totalorder %s11, 1
    %p68 = por %p66, %p67
    %p69 = scmp.ne.s32.totalorder %s61, %s64
    %p70 = scmp.eq.s32.totalorder %s11, 0
    %p71 = por %p69, %p70
    %p72 = scmp.ne.s32.totalorder %s61, %s64
    %p73 = scmp.eq.s32.totalorder %s16, 1
    %p74 = por %p72, %p73
    %p75 = scmp.ne.s32.totalorder %s64, %s65
    %p76 = scmp.eq.s32.totalorder %s16, 0
    %p77 = por %p75, %p76
    %p78 = scmp.ne.s32.totalorder %s64, %s65
    %p79 = scmp.eq.s32.totalorder %s17, 1
    %p80 = por %p78, %p79
    %p82 = scmp.ne.s32.totalorder %s65, %s81
    %p83 = scmp.eq.s32.totalorder %s17, 0
    %p84 = por %p82, %p83
    %s85 = ssub.s32 %s19, %s26
    %p86 = scmp.eq.s32.totalorder %s85, 0
    %s88 = sadd.s32 %s87, 1
    %s89 = scalar_select %p86, %s87, %s88
    %p92 = pneg %p86
    %p93 = scmp.eq.s32.totalorder %s11, 1
    %p94 = por %p92, %p93
    %p95 = scmp.ne.s32.totalorder %s87, %s90
    %p96 = scmp.eq.s32.totalorder %s11, 0
    %p97 = por %p95, %p96
    %p98 = scmp.ne.s32.totalorder %s87, %s90
    %p99 = scmp.eq.s32.totalorder %s16, 1
    %p100 = por %p98, %p99
    %p101 = scmp.ne.s32.totalorder %s90, %s91
    %p102 = scmp.eq.s32.totalorder %s16, 0
    %p103 = por %p101, %p102
    %p104 = scmp.ne.s32.totalorder %s90, %s91
    %p105 = scmp.eq.s32.totalorder %s17, 1
    %p106 = por %p104, %p105
    %p108 = scmp.ne.s32.totalorder %s91, %s107
    %p109 = scmp.eq.s32.totalorder %s17, 0
    %p110 = por %p108, %p109
    %s111 = ssub.s32 %s19, %s26
    %p112 = scmp.eq.s32.totalorder %s111, 0
    %s114 = sadd.s32 %s113, 1
    %s115 = scalar_select %p112, %s113, %s114
    %p118 = pneg %p112
    %p119 = scmp.eq.s32.totalorder %s11, 1
    %p120 = por %p118, %p119
    %p121 = scmp.ne.s32.totalorder %s113, %s116
    %p122 = scmp.eq.s32.totalorder %s11, 0
    %p123 = por %p121, %p122
    %p124 = scmp.ne.s32.totalorder %s113, %s116
    %p125 = scmp.eq.s32.totalorder %s16, 1
    %p126 = por %p124, %p125
    %p127 = scmp.ne.s32.totalorder %s116, %s117
    %p128 = scmp.eq.s32.totalorder %s16, 0
    %p129 = por %p127, %p128
    %p130 = scmp.ne.s32.totalorder %s116, %s117
    %p131 = scmp.eq.s32.totalorder %s17, 1
    %p132 = por %p130, %p131
    %p134 = scmp.ne.s32.totalorder %s117, %s133
    %p135 = scmp.eq.s32.totalorder %s17, 0
    %p136 = por %p134, %p135
    %s137 = ssub.s32 %s19, %s26
    %p138 = scmp.eq.s32.totalorder %s137, 0
    %s140 = sadd.s32 %s139, 1
    %s141 = scalar_select %p138, %s139, %s140
    %p144 = pneg %p138
    %p145 = scmp.eq.s32.totalorder %s11, 1
    %p146 = por %p144, %p145
    %p147 = scmp.ne.s32.totalorder %s139, %s142
    %p148 = scmp.eq.s32.totalorder %s11, 0
    %p149 = por %p147, %p148
    %p150 = scmp.ne.s32.totalorder %s139, %s142
    %p151 = scmp.eq.s32.totalorder %s16, 1
    %p152 = por %p150, %p151
    %p153 = scmp.ne.s32.totalorder %s142, %s143
    %p154 = scmp.eq.s32.totalorder %s16, 0
    %p155 = por %p153, %p154
    %p156 = scmp.ne.s32.totalorder %s142, %s143
    %p157 = scmp.eq.s32.totalorder %s17, 1
    %p158 = por %p156, %p157
    %p160 = scmp.ne.s32.totalorder %s143, %s159
    %p161 = scmp.eq.s32.totalorder %s17, 0
    %p162 = por %p160, %p161
    %s163 = ssub.s32 %s18, %s30
    %s164 = ssub.s32 %s19, %s26
    %s165 = sor.u32 %s163, %s164
    %p166 = scmp.eq.s32.totalorder %s165, 0
    %s168 = sadd.s32 %s167, 1
    %s169 = scalar_select %p166, %s167, %s168
    %p172 = pneg %p166
    %p173 = scmp.eq.s32.totalorder %s11, 1
    %p174 = por %p172, %p173
    %p175 = scmp.ne.s32.totalorder %s167, %s170
    %p176 = scmp.eq.s32.totalorder %s11, 0
    %p177 = por %p175, %p176
    %p178 = scmp.ne.s32.totalorder %s167, %s170
    %p179 = scmp.eq.s32.totalorder %s16, 1
    %p180 = por %p178, %p179
    %p181 = scmp.ne.s32.totalorder %s170, %s171
    %p182 = scmp.eq.s32.totalorder %s16, 0
    %p183 = por %p181, %p182
    %p184 = scmp.ne.s32.totalorder %s170, %s171
    %p185 = scmp.eq.s32.totalorder %s17, 1
    %p186 = por %p184, %p185
    %p188 = scmp.ne.s32.totalorder %s171, %s187
    %p189 = scmp.eq.s32.totalorder %s17, 0
    %p190 = por %p188, %p189
    %p191 = scmp.le.s32.totalorder 1, %s11
    %p192 = scmp.lt.s32.totalorder %s11, 3
    %p193 = pnand %p191, %p192
    %p194 = pneg %p193
    // Predicated region
    $region9: #{tpu_custom_call.1} parent=5 // pred_check
      _
    $region10: #{tpu_custom_call.1} parent=5 // pred_check_branch
      %196 = sbr.rel (%p193) target = $region12
    $region11: #{tpu_custom_call.1} parent=5 // pred_region
      %s197 = ssub.s32 %s11, 1
      // Predicated region
      $region13: #{tpu_custom_call.1} parent=11 // pred_check
        %p198 = pneg %p77
      $region14: #{tpu_custom_call.1} parent=11 // pred_check_branch
        %200 = sbr.rel (%p198) target = $region16
      $region15: #{tpu_custom_call.1} parent=11 // pred_region
        %p201 = scmp.lt.s32.totalorder %s21, 0
        %s202 = scalar_select %p201, %s21, 0
        %s203 = smul.addr %s202, 8
        %s204 = scalar_lea.vmem %s1, %s203
      $region16: #{tpu_custom_call.1} parent=11 // pred_fallthru
        _
      // Predicated region
      $region17: #{tpu_custom_call.1} parent=11 // pred_check
        %p205 = pneg %p103
      $region18: #{tpu_custom_call.1} parent=11 // pred_check_branch
        %207 = sbr.rel (%p205) target = $region20
      $region19: #{tpu_custom_call.1} parent=11 // pred_region
        %p208 = scmp.lt.s32.totalorder %s21, 0
        %s209 = scalar_select %p208, %s21, 0
        %s210 = scalar_lea.vmem %s2, %s209
      $region20: #{tpu_custom_call.1} parent=11 // pred_fallthru
        _
      // Predicated region
      $region21: #{tpu_custom_call.1} parent=11 // pred_check
        %p211 = pneg %p129
      $region22: #{tpu_custom_call.1} parent=11 // pred_check_branch
        %213 = sbr.rel (%p211) target = $region24
      $region23: #{tpu_custom_call.1} parent=11 // pred_region
        %p214 = scmp.lt.s32.totalorder %s21, 0
        %s215 = scalar_select %p214, %s21, 0
        %s216 = scalar_lea.vmem %s3, %s215
      $region24: #{tpu_custom_call.1} parent=11 // pred_fallthru
        _
      // Predicated region
      $region25: #{tpu_custom_call.1} parent=11 // pred_check
        %p217 = pneg %p155
      $region26: #{tpu_custom_call.1} parent=11 // pred_check_branch
        %219 = sbr.rel (%p217) target = $region28
      $region27: #{tpu_custom_call.1} parent=11 // pred_region
        %p220 = scmp.lt.s32.totalorder %s21, 0
        %s221 = scalar_select %p220, %s21, 0
        %s222 = scalar_lea.vmem %s4, %s221
      $region28: #{tpu_custom_call.1} parent=11 // pred_fallthru
        _
    $region12: #{tpu_custom_call.1} parent=5 // pred_fallthru
      _
    %p223 = scmp.lt.s32.totalorder %s11, 2
    // Predicated region
    $region29: #{tpu_custom_call.1} parent=5 // pred_check
      %p224 = pneg %p223
    $region30: #{tpu_custom_call.1} parent=5 // pred_check_branch
      %226 = sbr.rel (%p224) target = $region32
    $region31: #{tpu_custom_call.1} parent=5 // pred_region
      // Predicated region
      $region33: #{tpu_custom_call.1} parent=31 // pred_check
        %p227 = pneg %p45
      $region34: #{tpu_custom_call.1} parent=31 // pred_check_branch
        %229 = sbr.rel (%p227) target = $region36
      $region35: #{tpu_custom_call.1} parent=31 // pred_region
        %p230 = scmp.lt.s32.totalorder %s18, 1
        %s231 = scalar_select %p230, %s18, 1
        %p232 = scmp.lt.s32.totalorder %s19, 0
        %s233 = scalar_select %p232, %s19, 0
        %s234 = smul.addr %s231, 32
        %s235 = sadd.s32 %s233, %s234
        %s236 = smul.addr %s235, 8
        %s237 = scalar_lea.vmem %s0, %s236
      $region36: #{tpu_custom_call.1} parent=31 // pred_fallthru
        _
    $region32: #{tpu_custom_call.1} parent=5 // pred_fallthru
      _
    %p238 = scmp.le.s32.totalorder 1, %s11
    %p239 = scmp.lt.s32.totalorder %s11, 3
    %p240 = pnand %p238, %p239
    %p241 = pneg %p240
    // Predicated region
    $region37: #{tpu_custom_call.1} parent=5 // pred_check
      _
    $region38: #{tpu_custom_call.1} parent=5 // pred_check_branch
      %243 = sbr.rel (%p240) target = $region40
    $region39: #{tpu_custom_call.1} parent=5 // pred_region
      %s244 = ssub.s32 %s11, 1
      %p245 = scmp.lt.s32.totalorder %s20, 1
      %s246 = scalar_select %p245, %s20, 1
      %p247 = scmp.lt.s32.totalorder %s21, 0
      %s248 = scalar_select %p247, %s21, 0
      %s249 = smul.addr %s246, 32
      %s250 = sadd.s32 %s248, %s249
      %s251 = smul.addr %s250, 8
      %s252 = scalar_lea.vmem %s0, %s251
      %p253 = pneg %p51
      %p254 = pneg %p48
      %p255 = scmp.lt.s32.totalorder %s21, 0
      %s256 = scalar_select %p255, %s21, 0
      %s257 = smul.addr %s256, 8
      %s258 = scalar_lea.vmem %s1, %s257
      %p259 = pneg %p77
      %p260 = pneg %p74
      %p261 = scmp.lt.s32.totalorder %s21, 0
      %s262 = scalar_select %p261, %s21, 0
      %s263 = scalar_lea.vmem %s2, %s262
      %p264 = pneg %p103
      %p265 = pneg %p100
      %p266 = scmp.lt.s32.totalorder %s21, 0
      %s267 = scalar_select %p266, %s21, 0
      %s268 = scalar_lea.vmem %s3, %s267
      %p269 = pneg %p129
      %p270 = pneg %p126
      %p271 = scmp.lt.s32.totalorder %s21, 0
      %s272 = scalar_select %p271, %s21, 0
      %s273 = scalar_lea.vmem %s4, %s272
      %p274 = pneg %p155
      %p275 = pneg %p152
      %p276 = pneg %p183
      %p277 = pneg %p180
      %p278 = scmp.lt.s32.totalorder %s20, 1
      %s279 = scalar_select %p278, %s20, 1
      %p280 = scmp.lt.s32.totalorder %s21, 0
      %s281 = scalar_select %p280, %s21, 0
      %s282 = smul.addr %s279, 32
      %s283 = sadd.s32 %s281, %s282
      %s284 = smul.addr %s283, 8
      %s285 = scalar_lea.vmem %s5, %s284
      %p286 = scmp.lt.s32.totalorder %s20, 1
      %s287 = scalar_select %p286, %s20, 1
      %p288 = scmp.lt.s32.totalorder %s21, 0
      %s289 = scalar_select %p288, %s21, 0
      %s290 = smul.addr %s287, 32
      %s291 = sadd.s32 %s289, %s290
      %s292 = smul.addr %s291, 8
      %s293 = scalar_lea.vmem %s0, %s292
      %p294 = scmp.lt.s32.totalorder %s21, 0
      %s295 = scalar_select %p294, %s21, 0
      %s296 = smul.addr %s295, 8
      %s297 = scalar_lea.vmem %s1, %s296
      %p298 = scmp.lt.s32.totalorder %s21, 0
      %s299 = scalar_select %p298, %s21, 0
      %s300 = scalar_lea.vmem %s2, %s299
      %p301 = scmp.lt.s32.totalorder %s21, 0
      %s302 = scalar_select %p301, %s21, 0
      %s303 = scalar_lea.vmem %s3, %s302
      %p304 = scmp.lt.s32.totalorder %s21, 0
      %s305 = scalar_select %p304, %s21, 0
      %s306 = scalar_lea.vmem %s4, %s305
      %p307 = scmp.lt.s32.totalorder %s20, 1
      %s308 = scalar_select %p307, %s20, 1
      %p309 = scmp.lt.s32.totalorder %s21, 0
      %s310 = scalar_select %p309, %s21, 0
      %s311 = smul.addr %s308, 32
      %s312 = sadd.s32 %s310, %s311
      %s313 = smul.addr %s312, 8
      %s314 = scalar_lea.vmem %s5, %s313
      %vm315 = vcmask 31744
      %316 = vst.msk [vmem:[#allocation2] sm:$0xff] %vm315, 0.0
      %317 = vst.msk [vmem:[#allocation2 + $0x8] sm:$0xff] %vm315, 0.0
      %vm318 = vcmask 25600
      %319 = vst.msk [vmem:[#allocation2 + $0x10] sm:$0x3] %vm318, 0.0
      %320 = vst.msk [vmem:[#allocation2 + $0x18] sm:$0xff] %vm315, 0.0
      %321 = vst.msk [vmem:[#allocation2 + $0x20] sm:$0xff] %vm315, 0.0
      %322 = vst.msk [vmem:[#allocation2 + $0x28] sm:$0x3] %vm318, 0.0
      %323 = vst.msk [vmem:[#allocation2 + $0x30] sm:$0xff] %vm315, 0.0
      %324 = vst.msk [vmem:[#allocation2 + $0x38] sm:$0xff] %vm315, 0.0
      %325 = vst.msk [vmem:[#allocation2 + $0x40] sm:$0x3] %vm318, 0.0
      %326 = vst.msk [vmem:[#allocation2 + $0x48] sm:$0xff] %vm315, 0.0
      %327 = vst.msk [vmem:[#allocation2 + $0x50] sm:$0xff] %vm315, 0.0
      %328 = vst.msk [vmem:[#allocation2 + $0x58] sm:$0x3] %vm318, 0.0
      %329 = vst.msk [vmem:[#allocation2 + $0x60] sm:$0xff] %vm315, 0.0
      %330 = vst.msk [vmem:[#allocation2 + $0x68] sm:$0xff] %vm315, 0.0
      %331 = vst.msk [vmem:[#allocation2 + $0x70] sm:$0x3] %vm318, 0.0
      %332 = vst.msk [vmem:[#allocation2 + $0x78] sm:$0xff] %vm315, 0.0
      %333 = vst.msk [vmem:[#allocation2 + $0x80] sm:$0xff] %vm315, 0.0
      %334 = vst.msk [vmem:[#allocation2 + $0x88] sm:$0x3] %vm318, 0.0
      %335 = vst.msk [vmem:[#allocation2 + $0x90] sm:$0xff] %vm315, 0.0
      %336 = vst.msk [vmem:[#allocation2 + $0x98] sm:$0xff] %vm315, 0.0
      %337 = vst.msk [vmem:[#allocation2 + $0xa0] sm:$0x3] %vm318, 0.0
      %338 = vst.msk [vmem:[#allocation2 + $0xa8] sm:$0xff] %vm315, 0.0
      %339 = vst.msk [vmem:[#allocation2 + $0xb0] sm:$0xff] %vm315, 0.0
      %340 = vst.msk [vmem:[#allocation2 + $0xb8] sm:$0x3] %vm318, 0.0
      %341 = vst.msk [vmem:[#allocation2 + $0xc0] sm:$0xff] %vm315, 0.0
      %342 = vst.msk [vmem:[#allocation2 + $0xc8] sm:$0xff] %vm315, 0.0
      %343 = vst.msk [vmem:[#allocation2 + $0xd0] sm:$0x3] %vm318, 0.0
      %344 = vst.msk [vmem:[#allocation2 + $0xd8] sm:$0xff] %vm315, 0.0
      %345 = vst.msk [vmem:[#allocation2 + $0xe0] sm:$0xff] %vm315, 0.0
      %346 = vst.msk [vmem:[#allocation2 + $0xe8] sm:$0x3] %vm318, 0.0
      %347 = vst.msk [vmem:[#allocation2 + $0xf0] sm:$0xff] %vm315, 0.0
      %348 = vst.msk [vmem:[#allocation2 + $0xf8] sm:$0xff] %vm315, 0.0
      %349 = vst.msk [vmem:[#allocation2 + $0x100] sm:$0x3] %vm318, 0.0
      %350 = vst.msk [vmem:[#allocation2 + $0x108] sm:$0xff] %vm315, 0.0
      %351 = vst.msk [vmem:[#allocation2 + $0x110] sm:$0xff] %vm315, 0.0
      %352 = vst.msk [vmem:[#allocation2 + $0x118] sm:$0x3] %vm318, 0.0
      %353 = vst.msk [vmem:[#allocation2 + $0x120] sm:$0xff] %vm315, 0.0
      %354 = vst.msk [vmem:[#allocation2 + $0x128] sm:$0xff] %vm315, 0.0
      %355 = vst.msk [vmem:[#allocation2 + $0x130] sm:$0x3] %vm318, 0.0
      %356 = vst.msk [vmem:[#allocation2 + $0x138] sm:$0xff] %vm315, 0.0
      %357 = vst.msk [vmem:[#allocation2 + $0x140] sm:$0xff] %vm315, 0.0
      %358 = vst.msk [vmem:[#allocation2 + $0x148] sm:$0x3] %vm318, 0.0
      %359 = vst.msk [vmem:[#allocation2 + $0x150] sm:$0xff] %vm315, 0.0
      %360 = vst.msk [vmem:[#allocation2 + $0x158] sm:$0xff] %vm315, 0.0
      %361 = vst.msk [vmem:[#allocation2 + $0x160] sm:$0x3] %vm318, 0.0
      %362 = vst.msk [vmem:[#allocation2 + $0x168] sm:$0xff] %vm315, 0.0
      %363 = vst.msk [vmem:[#allocation2 + $0x170] sm:$0xff] %vm315, 0.0
      %364 = vst.msk [vmem:[#allocation2 + $0x178] sm:$0x3] %vm318, 0.0
      %365 = vst.msk [vmem:[#allocation2 + $0x180] sm:$0xff] %vm315, 0.0
      %366 = vst.msk [vmem:[#allocation2 + $0x188] sm:$0xff] %vm315, 0.0
      %367 = vst.msk [vmem:[#allocation2 + $0x190] sm:$0x3] %vm318, 0.0
      %368 = vst.msk [vmem:[#allocation2 + $0x198] sm:$0xff] %vm315, 0.0
      %369 = vst.msk [vmem:[#allocation2 + $0x1a0] sm:$0xff] %vm315, 0.0
      %370 = vst.msk [vmem:[#allocation2 + $0x1a8] sm:$0x3] %vm318, 0.0
      %v371 = vld [vmem:[%s293] sm:$0xff]
      %v372 = vld [vmem:[%s293 + $0x8] sm:$0xff]
      %v373 = vld [vmem:[%s293 + $0x10] sm:$0xff]
      %v374 = vld [vmem:[%s293 + $0x18] sm:$0xff]
      %v375 = vld [vmem:[%s293 + $0x20] sm:$0xff]
      %v376 = vld [vmem:[%s293 + $0x28] sm:$0xff]
      %v377 = vld [vmem:[%s293 + $0x30] sm:$0xff]
      %v378 = vld [vmem:[%s293 + $0x38] sm:$0xff]
      %v379 = vld [vmem:[%s293 + $0x40] sm:$0xff]
      %v380 = vld [vmem:[%s293 + $0x48] sm:$0xff]
      %v381 = vld [vmem:[%s293 + $0x50] sm:$0xff]
      %v382 = vld [vmem:[%s293 + $0x58] sm:$0xff]
      %v383 = vld [vmem:[%s293 + $0x60] sm:$0xff]
      %v384 = vld [vmem:[%s293 + $0x68] sm:$0xff]
      %v385 = vld [vmem:[%s293 + $0x70] sm:$0xff]
      %v386 = vld [vmem:[%s293 + $0x78] sm:$0xff]
      %v387 = vld [vmem:[%s293 + $0x80] sm:$0xff]
      %v388 = vld [vmem:[%s293 + $0x88] sm:$0xff]
      %v389 = vld [vmem:[%s293 + $0x90] sm:$0xff]
      %v390 = vld [vmem:[%s293 + $0x98] sm:$0xff]
      %v391 = vld [vmem:[%s293 + $0xa0] sm:$0xff]
      %v392 = vld [vmem:[%s293 + $0xa8] sm:$0xff]
      %v393 = vld [vmem:[%s293 + $0xb0] sm:$0xff]
      %v394 = vld [vmem:[%s293 + $0xb8] sm:$0xff]
      %v395 = vld [vmem:[%s293 + $0xc0] sm:$0xff]
      %v396 = vld [vmem:[%s293 + $0xc8] sm:$0xff]
      %v397 = vld [vmem:[%s293 + $0xd0] sm:$0xff]
      %v398 = vld [vmem:[%s293 + $0xd8] sm:$0xff]
      %v399 = vld [vmem:[%s293 + $0xe0] sm:$0xff]
      %v400 = vld [vmem:[%s293 + $0xe8] sm:$0xff]
      %v401 = vld [vmem:[%s293 + $0xf0] sm:$0xff]
      %v402 = vld [vmem:[%s293 + $0xf8] sm:$0xff]
      %s403 = scalar_lea.vmem [#allocation2], 24
      %404 = vst.msk [vmem:[%s403 + $0x1] sm:$0xff] %vm315, %v371
      %405 = vst.msk [vmem:[%s403 + $0x9] sm:$0xff] %vm315, %v372
      %406 = vst.msk [vmem:[%s403 + $0x19] sm:$0xff] %vm315, %v373
      %407 = vst.msk [vmem:[%s403 + $0x21] sm:$0xff] %vm315, %v374
      %408 = vst.msk [vmem:[%s403 + $0x31] sm:$0xff] %vm315, %v375
      %409 = vst.msk [vmem:[%s403 + $0x39] sm:$0xff] %vm315, %v376
      %410 = vst.msk [vmem:[%s403 + $0x49] sm:$0xff] %vm315, %v377
      %411 = vst.msk [vmem:[%s403 + $0x51] sm:$0xff] %vm315, %v378
      %412 = vst.msk [vmem:[%s403 + $0x61] sm:$0xff] %vm315, %v379
      %413 = vst.msk [vmem:[%s403 + $0x69] sm:$0xff] %vm315, %v380
      %414 = vst.msk [vmem:[%s403 + $0x79] sm:$0xff] %vm315, %v381
      %415 = vst.msk [vmem:[%s403 + $0x81] sm:$0xff] %vm315, %v382
      %416 = vst.msk [vmem:[%s403 + $0x91] sm:$0xff] %vm315, %v383
      %417 = vst.msk [vmem:[%s403 + $0x99] sm:$0xff] %vm315, %v384
      %418 = vst.msk [vmem:[%s403 + $0xa9] sm:$0xff] %vm315, %v385
      %419 = vst.msk [vmem:[%s403 + $0xb1] sm:$0xff] %vm315, %v386
      %420 = vst.msk [vmem:[%s403 + $0xc1] sm:$0xff] %vm315, %v387
      %421 = vst.msk [vmem:[%s403 + $0xc9] sm:$0xff] %vm315, %v388
      %422 = vst.msk [vmem:[%s403 + $0xd9] sm:$0xff] %vm315, %v389
      %423 = vst.msk [vmem:[%s403 + $0xe1] sm:$0xff] %vm315, %v390
      %424 = vst.msk [vmem:[%s403 + $0xf1] sm:$0xff] %vm315, %v391
      %425 = vst.msk [vmem:[%s403 + $0xf9] sm:$0xff] %vm315, %v392
      %426 = vst.msk [vmem:[%s403 + $0x109] sm:$0xff] %vm315, %v393
      %427 = vst.msk [vmem:[%s403 + $0x111] sm:$0xff] %vm315, %v394
      %428 = vst.msk [vmem:[%s403 + $0x121] sm:$0xff] %vm315, %v395
      %429 = vst.msk [vmem:[%s403 + $0x129] sm:$0xff] %vm315, %v396
      %430 = vst.msk [vmem:[%s403 + $0x139] sm:$0xff] %vm315, %v397
      %431 = vst.msk [vmem:[%s403 + $0x141] sm:$0xff] %vm315, %v398
      %432 = vst.msk [vmem:[%s403 + $0x151] sm:$0xff] %vm315, %v399
      %433 = vst.msk [vmem:[%s403 + $0x159] sm:$0xff] %vm315, %v400
      %434 = vst.msk [vmem:[%s403 + $0x169] sm:$0xff] %vm315, %v401
      %435 = vst.msk [vmem:[%s403 + $0x171] sm:$0xff] %vm315, %v402
      %v436 = vld [vmem:[%s297] sm:$0x1]
      %v437 = vld [vmem:[#allocation2] sm:$0xff]
      %v438 = vld [vmem:[#allocation2 + $0x8] sm:$0xff]
      %v439 = vld [vmem:[#allocation2 + $0x18] sm:$0xff]
      %v440 = vld [vmem:[#allocation2 + $0x20] sm:$0xff]
      %v441 = vld [vmem:[#allocation2 + $0x30] sm:$0xff]
      %v442 = vld [vmem:[#allocation2 + $0x38] sm:$0xff]
      %v443 = vld [vmem:[#allocation2 + $0x48] sm:$0xff]
      %v444 = vld [vmem:[#allocation2 + $0x50] sm:$0xff]
      %v445 = vld [vmem:[#allocation2 + $0x60] sm:$0xff]
      %v446 = vld [vmem:[#allocation2 + $0x68] sm:$0xff]
      %v447 = vld [vmem:[#allocation2 + $0x78] sm:$0xff]
      %v448 = vld [vmem:[#allocation2 + $0x80] sm:$0xff]
      %v449 = vld [vmem:[#allocation2 + $0x90] sm:$0xff]
      %v450 = vld [vmem:[#allocation2 + $0x98] sm:$0xff]
      %v451 = vld [vmem:[#allocation2 + $0xa8] sm:$0xff]
      %v452 = vld [vmem:[#allocation2 + $0xb0] sm:$0xff]
      %v453 = vld [vmem:[#allocation2 + $0xc0] sm:$0xff]
      %v454 = vld [vmem:[#allocation2 + $0xc8] sm:$0xff]
      %v455 = vld [vmem:[#allocation2 + $0xd8] sm:$0xff]
      %v456 = vld [vmem:[#allocation2 + $0xe0] sm:$0xff]
      %v457 = vld [vmem:[#allocation2 + $0xf0] sm:$0xff]
      %v458 = vld [vmem:[#allocation2 + $0xf8] sm:$0xff]
      %v459 = vld [vmem:[#allocation2 + $0x108] sm:$0xff]
      %v460 = vld [vmem:[#allocation2 + $0x110] sm:$0xff]
      %v461 = vld [vmem:[#allocation2 + $0x120] sm:$0xff]
      %v462 = vld [vmem:[#allocation2 + $0x128] sm:$0xff]
      %v463 = vld [vmem:[#allocation2 + $0x138] sm:$0xff]
      %v464 = vld [vmem:[#allocation2 + $0x140] sm:$0xff]
      %v465 = vld [vmem:[#allocation2 + $0x150] sm:$0xff]
      %v466 = vld [vmem:[#allocation2 + $0x158] sm:$0xff]
      %v467 = vld [vmem:[#allocation2 + $0x168] sm:$0xff]
      %v468 = vld [vmem:[#allocation2 + $0x170] sm:$0xff]
      %v469 = vlaneseq
      %v470 = vshrl.u32 %v469, 7
      %v471 = vsub.s32 0, %v470
      %v472 = vrot.slane %v436, %v471
      %v473 = vmul.f32 %v472, %v437
      %v474 = vmul.f32 %v472, %v438
      %v475 = vmul.f32 %v472, %v439
      %v476 = vmul.f32 %v472, %v440
      %v477 = vmul.f32 %v472, %v441
      %v478 = vmul.f32 %v472, %v442
      %v479 = vmul.f32 %v472, %v443
      %v480 = vmul.f32 %v472, %v444
      %v481 = vmul.f32 %v472, %v445
      %v482 = vmul.f32 %v472, %v446
      %v483 = vmul.f32 %v472, %v447
      %v484 = vmul.f32 %v472, %v448
      %v485 = vmul.f32 %v472, %v449
      %v486 = vmul.f32 %v472, %v450
      %v487 = vmul.f32 %v472, %v451
      %v488 = vmul.f32 %v472, %v452
      %v489 = vmul.f32 %v472, %v453
      %v490 = vmul.f32 %v472, %v454
      %v491 = vmul.f32 %v472, %v455
      %v492 = vmul.f32 %v472, %v456
      %v493 = vmul.f32 %v472, %v457
      %v494 = vmul.f32 %v472, %v458
      %v495 = vmul.f32 %v472, %v459
      %v496 = vmul.f32 %v472, %v460
      %v497 = vmul.f32 %v472, %v461
      %v498 = vmul.f32 %v472, %v462
      %v499 = vmul.f32 %v472, %v463
      %v500 = vmul.f32 %v472, %v464
      %v501 = vmul.f32 %v472, %v465
      %v502 = vmul.f32 %v472, %v466
      %v503 = vmul.f32 %v472, %v467
      %v504 = vmul.f32 %v472, %v468
      %v505 = vadd.f32 %v473, 0.0
      %v506 = vadd.f32 %v474, 0.0
      %v507 = vadd.f32 %v475, 0.0
      %v508 = vadd.f32 %v476, 0.0
      %v509 = vadd.f32 %v477, 0.0
      %v510 = vadd.f32 %v478, 0.0
      %v511 = vadd.f32 %v479, 0.0
      %v512 = vadd.f32 %v480, 0.0
      %v513 = vadd.f32 %v481, 0.0
      %v514 = vadd.f32 %v482, 0.0
      %v515 = vadd.f32 %v483, 0.0
      %v516 = vadd.f32 %v484, 0.0
      %v517 = vadd.f32 %v485, 0.0
      %v518 = vadd.f32 %v486, 0.0
      %v519 = vadd.f32 %v487, 0.0
      %v520 = vadd.f32 %v488, 0.0
      %v521 = vadd.f32 %v489, 0.0
      %v522 = vadd.f32 %v490, 0.0
      %v523 = vadd.f32 %v491, 0.0
      %v524 = vadd.f32 %v492, 0.0
      %v525 = vadd.f32 %v493, 0.0
      %v526 = vadd.f32 %v494, 0.0
      %v527 = vadd.f32 %v495, 0.0
      %v528 = vadd.f32 %v496, 0.0
      %v529 = vadd.f32 %v497, 0.0
      %v530 = vadd.f32 %v498, 0.0
      %v531 = vadd.f32 %v499, 0.0
      %v532 = vadd.f32 %v500, 0.0
      %v533 = vadd.f32 %v501, 0.0
      %v534 = vadd.f32 %v502, 0.0
      %v535 = vadd.f32 %v503, 0.0
      %v536 = vadd.f32 %v504, 0.0
      %v537 = vld [vmem:[%s297 + $0x1] sm:$0x1]
      %v538 = vld [vmem:[#allocation2 + $0x1] sm:$0xff]
      %v539 = vld [vmem:[#allocation2 + $0x9] sm:$0xff]
      %v540 = vld [vmem:[#allocation2 + $0x19] sm:$0xff]
      %v541 = vld [vmem:[#allocation2 + $0x21] sm:$0xff]
      %v542 = vld [vmem:[#allocation2 + $0x31] sm:$0xff]
      %v543 = vld [vmem:[#allocation2 + $0x39] sm:$0xff]
      %v544 = vld [vmem:[#allocation2 + $0x49] sm:$0xff]
      %v545 = vld [vmem:[#allocation2 + $0x51] sm:$0xff]
      %v546 = vld [vmem:[#allocation2 + $0x61] sm:$0xff]
      %v547 = vld [vmem:[#allocation2 + $0x69] sm:$0xff]
      %v548 = vld [vmem:[#allocation2 + $0x79] sm:$0xff]
      %v549 = vld [vmem:[#allocation2 + $0x81] sm:$0xff]
      %v550 = vld [vmem:[#allocation2 + $0x91] sm:$0xff]
      %v551 = vld [vmem:[#allocation2 + $0x99] sm:$0xff]
      %v552 = vld [vmem:[#allocation2 + $0xa9] sm:$0xff]
      %v553 = vld [vmem:[#allocation2 + $0xb1] sm:$0xff]
      %v554 = vld [vmem:[#allocation2 + $0xc1] sm:$0xff]
      %v555 = vld [vmem:[#allocation2 + $0xc9] sm:$0xff]
      %v556 = vld [vmem:[#allocation2 + $0xd9] sm:$0xff]
      %v557 = vld [vmem:[#allocation2 + $0xe1] sm:$0xff]
      %v558 = vld [vmem:[#allocation2 + $0xf1] sm:$0xff]
      %v559 = vld [vmem:[#allocation2 + $0xf9] sm:$0xff]
      %v560 = vld [vmem:[#allocation2 + $0x109] sm:$0xff]
      %v561 = vld [vmem:[#allocation2 + $0x111] sm:$0xff]
      %v562 = vld [vmem:[#allocation2 + $0x121] sm:$0xff]
      %v563 = vld [vmem:[#allocation2 + $0x129] sm:$0xff]
      %v564 = vld [vmem:[#allocation2 + $0x139] sm:$0xff]
      %v565 = vld [vmem:[#allocation2 + $0x141] sm:$0xff]
      %v566 = vld [vmem:[#allocation2 + $0x151] sm:$0xff]
      %v567 = vld [vmem:[#allocation2 + $0x159] sm:$0xff]
      %v568 = vld [vmem:[#allocation2 + $0x169] sm:$0xff]
      %v569 = vld [vmem:[#allocation2 + $0x171] sm:$0xff]
      %v570 = vlaneseq
      %v571 = vshrl.u32 %v570, 7
      %v572 = vsub.s32 0, %v571
      %v573 = vrot.slane %v537, %v572
      %v574 = vmul.f32 %v573, %v538
      %v575 = vmul.f32 %v573, %v539
      %v576 = vmul.f32 %v573, %v540
      %v577 = vmul.f32 %v573, %v541
      %v578 = vmul.f32 %v573, %v542
      %v579 = vmul.f32 %v573, %v543
      %v580 = vmul.f32 %v573, %v544
      %v581 = vmul.f32 %v573, %v545
      %v582 = vmul.f32 %v573, %v546
      %v583 = vmul.f32 %v573, %v547
      %v584 = vmul.f32 %v573, %v548
      %v585 = vmul.f32 %v573, %v549
      %v586 = vmul.f32 %v573, %v550
      %v587 = vmul.f32 %v573, %v551
      %v588 = vmul.f32 %v573, %v552
      %v589 = vmul.f32 %v573, %v553
      %v590 = vmul.f32 %v573, %v554
      %v591 = vmul.f32 %v573, %v555
      %v592 = vmul.f32 %v573, %v556
      %v593 = vmul.f32 %v573, %v557
      %v594 = vmul.f32 %v573, %v558
      %v595 = vmul.f32 %v573, %v559
      %v596 = vmul.f32 %v573, %v560
      %v597 = vmul.f32 %v573, %v561
      %v598 = vmul.f32 %v573, %v562
      %v599 = vmul.f32 %v573, %v563
      %v600 = vmul.f32 %v573, %v564
      %v601 = vmul.f32 %v573, %v565
      %v602 = vmul.f32 %v573, %v566
      %v603 = vmul.f32 %v573, %v567
      %v604 = vmul.f32 %v573, %v568
      %v605 = vmul.f32 %v573, %v569
      %v606 = vadd.f32 %v505, %v574
      %v607 = vadd.f32 %v506, %v575
      %v608 = vadd.f32 %v507, %v576
      %v609 = vadd.f32 %v508, %v577
      %v610 = vadd.f32 %v509, %v578
      %v611 = vadd.f32 %v510, %v579
      %v612 = vadd.f32 %v511, %v580
      %v613 = vadd.f32 %v512, %v581
      %v614 = vadd.f32 %v513, %v582
      %v615 = vadd.f32 %v514, %v583
      %v616 = vadd.f32 %v515, %v584
      %v617 = vadd.f32 %v516, %v585
      %v618 = vadd.f32 %v517, %v586
      %v619 = vadd.f32 %v518, %v587
      %v620 = vadd.f32 %v519, %v588
      %v621 = vadd.f32 %v520, %v589
      %v622 = vadd.f32 %v521, %v590
      %v623 = vadd.f32 %v522, %v591
      %v624 = vadd.f32 %v523, %v592
      %v625 = vadd.f32 %v524, %v593
      %v626 = vadd.f32 %v525, %v594
      %v627 = vadd.f32 %v526, %v595
      %v628 = vadd.f32 %v527, %v596
      %v629 = vadd.f32 %v528, %v597
      %v630 = vadd.f32 %v529, %v598
      %v631 = vadd.f32 %v530, %v599
      %v632 = vadd.f32 %v531, %v600
      %v633 = vadd.f32 %v532, %v601
      %v634 = vadd.f32 %v533, %v602
      %v635 = vadd.f32 %v534, %v603
      %v636 = vadd.f32 %v535, %v604
      %v637 = vadd.f32 %v536, %v605
      %v638 = vld [vmem:[%s297 + $0x2] sm:$0x1]
      %v639 = vld [vmem:[#allocation2 + $0x2] sm:$0xff]
      %v640 = vld [vmem:[#allocation2 + $0xa] sm:$0xff]
      %v641 = vld [vmem:[#allocation2 + $0x1a] sm:$0xff]
      %v642 = vld [vmem:[#allocation2 + $0x22] sm:$0xff]
      %v643 = vld [vmem:[#allocation2 + $0x32] sm:$0xff]
      %v644 = vld [vmem:[#allocation2 + $0x3a] sm:$0xff]
      %v645 = vld [vmem:[#allocation2 + $0x4a] sm:$0xff]
      %v646 = vld [vmem:[#allocation2 + $0x52] sm:$0xff]
      %v647 = vld [vmem:[#allocation2 + $0x62] sm:$0xff]
      %v648 = vld [vmem:[#allocation2 + $0x6a] sm:$0xff]
      %v649 = vld [vmem:[#allocation2 + $0x7a] sm:$0xff]
      %v650 = vld [vmem:[#allocation2 + $0x82] sm:$0xff]
      %v651 = vld [vmem:[#allocation2 + $0x92] sm:$0xff]
      %v652 = vld [vmem:[#allocation2 + $0x9a] sm:$0xff]
      %v653 = vld [vmem:[#allocation2 + $0xaa] sm:$0xff]
      %v654 = vld [vmem:[#allocation2 + $0xb2] sm:$0xff]
      %v655 = vld [vmem:[#allocation2 + $0xc2] sm:$0xff]
      %v656 = vld [vmem:[#allocation2 + $0xca] sm:$0xff]
      %v657 = vld [vmem:[#allocation2 + $0xda] sm:$0xff]
      %v658 = vld [vmem:[#allocation2 + $0xe2] sm:$0xff]
      %v659 = vld [vmem:[#allocation2 + $0xf2] sm:$0xff]
      %v660 = vld [vmem:[#allocation2 + $0xfa] sm:$0xff]
      %v661 = vld [vmem:[#allocation2 + $0x10a] sm:$0xff]
      %v662 = vld [vmem:[#allocation2 + $0x112] sm:$0xff]
      %v663 = vld [vmem:[#allocation2 + $0x122] sm:$0xff]
      %v664 = vld [vmem:[#allocation2 + $0x12a] sm:$0xff]
      %v665 = vld [vmem:[#allocation2 + $0x13a] sm:$0xff]
      %v666 = vld [vmem:[#allocation2 + $0x142] sm:$0xff]
      %v667 = vld [vmem:[#allocation2 + $0x152] sm:$0xff]
      %v668 = vld [vmem:[#allocation2 + $0x15a] sm:$0xff]
      %v669 = vld [vmem:[#allocation2 + $0x16a] sm:$0xff]
      %v670 = vld [vmem:[#allocation2 + $0x172] sm:$0xff]
      %v671 = vlaneseq
      %v672 = vshrl.u32 %v671, 7
      %v673 = vsub.s32 0, %v672
      %v674 = vrot.slane %v638, %v673
      %v675 = vmul.f32 %v674, %v639
      %v676 = vmul.f32 %v674, %v640
      %v677 = vmul.f32 %v674, %v641
      %v678 = vmul.f32 %v674, %v642
      %v679 = vmul.f32 %v674, %v643
      %v680 = vmul.f32 %v674, %v644
      %v681 = vmul.f32 %v674, %v645
      %v682 = vmul.f32 %v674, %v646
      %v683 = vmul.f32 %v674, %v647
      %v684 = vmul.f32 %v674, %v648
      %v685 = vmul.f32 %v674, %v649
      %v686 = vmul.f32 %v674, %v650
      %v687 = vmul.f32 %v674, %v651
      %v688 = vmul.f32 %v674, %v652
      %v689 = vmul.f32 %v674, %v653
      %v690 = vmul.f32 %v674, %v654
      %v691 = vmul.f32 %v674, %v655
      %v692 = vmul.f32 %v674, %v656
      %v693 = vmul.f32 %v674, %v657
      %v694 = vmul.f32 %v674, %v658
      %v695 = vmul.f32 %v674, %v659
      %v696 = vmul.f32 %v674, %v660
      %v697 = vmul.f32 %v674, %v661
      %v698 = vmul.f32 %v674, %v662
      %v699 = vmul.f32 %v674, %v663
      %v700 = vmul.f32 %v674, %v664
      %v701 = vmul.f32 %v674, %v665
      %v702 = vmul.f32 %v674, %v666
      %v703 = vmul.f32 %v674, %v667
      %v704 = vmul.f32 %v674, %v668
      %v705 = vmul.f32 %v674, %v669
      %v706 = vmul.f32 %v674, %v670
      %v707 = vadd.f32 %v606, %v675
      %v708 = vadd.f32 %v607, %v676
      %v709 = vadd.f32 %v608, %v677
      %v710 = vadd.f32 %v609, %v678
      %v711 = vadd.f32 %v610, %v679
      %v712 = vadd.f32 %v611, %v680
      %v713 = vadd.f32 %v612, %v681
      %v714 = vadd.f32 %v613, %v682
      %v715 = vadd.f32 %v614, %v683
      %v716 = vadd.f32 %v615, %v684
      %v717 = vadd.f32 %v616, %v685
      %v718 = vadd.f32 %v617, %v686
      %v719 = vadd.f32 %v618, %v687
      %v720 = vadd.f32 %v619, %v688
      %v721 = vadd.f32 %v620, %v689
      %v722 = vadd.f32 %v621, %v690
      %v723 = vadd.f32 %v622, %v691
      %v724 = vadd.f32 %v623, %v692
      %v725 = vadd.f32 %v624, %v693
      %v726 = vadd.f32 %v625, %v694
      %v727 = vadd.f32 %v626, %v695
      %v728 = vadd.f32 %v627, %v696
      %v729 = vadd.f32 %v628, %v697
      %v730 = vadd.f32 %v629, %v698
      %v731 = vadd.f32 %v630, %v699
      %v732 = vadd.f32 %v631, %v700
      %v733 = vadd.f32 %v632, %v701
      %v734 = vadd.f32 %v633, %v702
      %v735 = vadd.f32 %v634, %v703
      %v736 = vadd.f32 %v635, %v704
      %v737 = vadd.f32 %v636, %v705
      %v738 = vadd.f32 %v637, %v706
      %v739 = vld [vmem:[%s297 + $0x3] sm:$0x1]
      %v740 = vld [vmem:[%s403] sm:$0xff]
      %v741 = vld [vmem:[%s403 + $0x8] sm:$0xff]
      %v742 = vld [vmem:[%s403 + $0x18] sm:$0xff]
      %v743 = vld [vmem:[%s403 + $0x20] sm:$0xff]
      %v744 = vld [vmem:[%s403 + $0x30] sm:$0xff]
      %v745 = vld [vmem:[%s403 + $0x38] sm:$0xff]
      %v746 = vld [vmem:[%s403 + $0x48] sm:$0xff]
      %v747 = vld [vmem:[%s403 + $0x50] sm:$0xff]
      %v748 = vld [vmem:[%s403 + $0x60] sm:$0xff]
      %v749 = vld [vmem:[%s403 + $0x68] sm:$0xff]
      %v750 = vld [vmem:[%s403 + $0x78] sm:$0xff]
      %v751 = vld [vmem:[%s403 + $0x80] sm:$0xff]
      %v752 = vld [vmem:[%s403 + $0x90] sm:$0xff]
      %v753 = vld [vmem:[%s403 + $0x98] sm:$0xff]
      %v754 = vld [vmem:[%s403 + $0xa8] sm:$0xff]
      %v755 = vld [vmem:[%s403 + $0xb0] sm:$0xff]
      %v756 = vld [vmem:[%s403 + $0xc0] sm:$0xff]
      %v757 = vld [vmem:[%s403 + $0xc8] sm:$0xff]
      %v758 = vld [vmem:[%s403 + $0xd8] sm:$0xff]
      %v759 = vld [vmem:[%s403 + $0xe0] sm:$0xff]
      %v760 = vld [vmem:[%s403 + $0xf0] sm:$0xff]
      %v761 = vld [vmem:[%s403 + $0xf8] sm:$0xff]
      %v762 = vld [vmem:[%s403 + $0x108] sm:$0xff]
      %v763 = vld [vmem:[%s403 + $0x110] sm:$0xff]
      %v764 = vld [vmem:[%s403 + $0x120] sm:$0xff]
      %v765 = vld [vmem:[%s403 + $0x128] sm:$0xff]
      %v766 = vld [vmem:[%s403 + $0x138] sm:$0xff]
      %v767 = vld [vmem:[%s403 + $0x140] sm:$0xff]
      %v768 = vld [vmem:[%s403 + $0x150] sm:$0xff]
      %v769 = vld [vmem:[%s403 + $0x158] sm:$0xff]
      %v770 = vld [vmem:[%s403 + $0x168] sm:$0xff]
      %v771 = vld [vmem:[%s403 + $0x170] sm:$0xff]
      %v772 = vlaneseq
      %v773 = vshrl.u32 %v772, 7
      %v774 = vsub.s32 0, %v773
      %v775 = vrot.slane %v739, %v774
      %v776 = vmul.f32 %v775, %v740
      %v777 = vmul.f32 %v775, %v741
      %v778 = vmul.f32 %v775, %v742
      %v779 = vmul.f32 %v775, %v743
      %v780 = vmul.f32 %v775, %v744
      %v781 = vmul.f32 %v775, %v745
      %v782 = vmul.f32 %v775, %v746
      %v783 = vmul.f32 %v775, %v747
      %v784 = vmul.f32 %v775, %v748
      %v785 = vmul.f32 %v775, %v749
      %v786 = vmul.f32 %v775, %v750
      %v787 = vmul.f32 %v775, %v751
      %v788 = vmul.f32 %v775, %v752
      %v789 = vmul.f32 %v775, %v753
      %v790 = vmul.f32 %v775, %v754
      %v791 = vmul.f32 %v775, %v755
      %v792 = vmul.f32 %v775, %v756
      %v793 = vmul.f32 %v775, %v757
      %v794 = vmul.f32 %v775, %v758
      %v795 = vmul.f32 %v775, %v759
      %v796 = vmul.f32 %v775, %v760
      %v797 = vmul.f32 %v775, %v761
      %v798 = vmul.f32 %v775, %v762
      %v799 = vmul.f32 %v775, %v763
      %v800 = vmul.f32 %v775, %v764
      %v801 = vmul.f32 %v775, %v765
      %v802 = vmul.f32 %v775, %v766
      %v803 = vmul.f32 %v775, %v767
      %v804 = vmul.f32 %v775, %v768
      %v805 = vmul.f32 %v775, %v769
      %v806 = vmul.f32 %v775, %v770
      %v807 = vmul.f32 %v775, %v771
      %v808 = vadd.f32 %v707, %v776
      %v809 = vadd.f32 %v708, %v777
      %v810 = vadd.f32 %v709, %v778
      %v811 = vadd.f32 %v710, %v779
      %v812 = vadd.f32 %v711, %v780
      %v813 = vadd.f32 %v712, %v781
      %v814 = vadd.f32 %v713, %v782
      %v815 = vadd.f32 %v714, %v783
      %v816 = vadd.f32 %v715, %v784
      %v817 = vadd.f32 %v716, %v785
      %v818 = vadd.f32 %v717, %v786
      %v819 = vadd.f32 %v718, %v787
      %v820 = vadd.f32 %v719, %v788
      %v821 = vadd.f32 %v720, %v789
      %v822 = vadd.f32 %v721, %v790
      %v823 = vadd.f32 %v722, %v791
      %v824 = vadd.f32 %v723, %v792
      %v825 = vadd.f32 %v724, %v793
      %v826 = vadd.f32 %v725, %v794
      %v827 = vadd.f32 %v726, %v795
      %v828 = vadd.f32 %v727, %v796
      %v829 = vadd.f32 %v728, %v797
      %v830 = vadd.f32 %v729, %v798
      %v831 = vadd.f32 %v730, %v799
      %v832 = vadd.f32 %v731, %v800
      %v833 = vadd.f32 %v732, %v801
      %v834 = vadd.f32 %v733, %v802
      %v835 = vadd.f32 %v734, %v803
      %v836 = vadd.f32 %v735, %v804
      %v837 = vadd.f32 %v736, %v805
      %v838 = vadd.f32 %v737, %v806
      %v839 = vadd.f32 %v738, %v807
      %v840 = vld [vmem:[%s297 + $0x4] sm:$0x1]
      %v841 = vld [vmem:[%s403 + $0x1] sm:$0xff]
      %v842 = vld [vmem:[%s403 + $0x9] sm:$0xff]
      %v843 = vld [vmem:[%s403 + $0x19] sm:$0xff]
      %v844 = vld [vmem:[%s403 + $0x21] sm:$0xff]
      %v845 = vld [vmem:[%s403 + $0x31] sm:$0xff]
      %v846 = vld [vmem:[%s403 + $0x39] sm:$0xff]
      %v847 = vld [vmem:[%s403 + $0x49] sm:$0xff]
      %v848 = vld [vmem:[%s403 + $0x51] sm:$0xff]
      %v849 = vld [vmem:[%s403 + $0x61] sm:$0xff]
      %v850 = vld [vmem:[%s403 + $0x69] sm:$0xff]
      %v851 = vld [vmem:[%s403 + $0x79] sm:$0xff]
      %v852 = vld [vmem:[%s403 + $0x81] sm:$0xff]
      %v853 = vld [vmem:[%s403 + $0x91] sm:$0xff]
      %v854 = vld [vmem:[%s403 + $0x99] sm:$0xff]
      %v855 = vld [vmem:[%s403 + $0xa9] sm:$0xff]
      %v856 = vld [vmem:[%s403 + $0xb1] sm:$0xff]
      %v857 = vld [vmem:[%s403 + $0xc1] sm:$0xff]
      %v858 = vld [vmem:[%s403 + $0xc9] sm:$0xff]
      %v859 = vld [vmem:[%s403 + $0xd9] sm:$0xff]
      %v860 = vld [vmem:[%s403 + $0xe1] sm:$0xff]
      %v861 = vld [vmem:[%s403 + $0xf1] sm:$0xff]
      %v862 = vld [vmem:[%s403 + $0xf9] sm:$0xff]
      %v863 = vld [vmem:[%s403 + $0x109] sm:$0xff]
      %v864 = vld [vmem:[%s403 + $0x111] sm:$0xff]
      %v865 = vld [vmem:[%s403 + $0x121] sm:$0xff]
      %v866 = vld [vmem:[%s403 + $0x129] sm:$0xff]
      %v867 = vld [vmem:[%s403 + $0x139] sm:$0xff]
      %v868 = vld [vmem:[%s403 + $0x141] sm:$0xff]
      %v869 = vld [vmem:[%s403 + $0x151] sm:$0xff]
      %v870 = vld [vmem:[%s403 + $0x159] sm:$0xff]
      %v871 = vld [vmem:[%s403 + $0x169] sm:$0xff]
      %v872 = vld [vmem:[%s403 + $0x171] sm:$0xff]
      %v873 = vlaneseq
      %v874 = vshrl.u32 %v873, 7
      %v875 = vsub.s32 0, %v874
      %v876 = vrot.slane %v840, %v875
      %v877 = vmul.f32 %v876, %v841
      %v878 = vmul.f32 %v876, %v842
      %v879 = vmul.f32 %v876, %v843
      %v880 = vmul.f32 %v876, %v844
      %v881 = vmul.f32 %v876, %v845
      %v882 = vmul.f32 %v876, %v846
      %v883 = vmul.f32 %v876, %v847
      %v884 = vmul.f32 %v876, %v848
      %v885 = vmul.f32 %v876, %v849
      %v886 = vmul.f32 %v876, %v850
      %v887 = vmul.f32 %v876, %v851
      %v888 = vmul.f32 %v876, %v852
      %v889 = vmul.f32 %v876, %v853
      %v890 = vmul.f32 %v876, %v854
      %v891 = vmul.f32 %v876, %v855
      %v892 = vmul.f32 %v876, %v856
      %v893 = vmul.f32 %v876, %v857
      %v894 = vmul.f32 %v876, %v858
      %v895 = vmul.f32 %v876, %v859
      %v896 = vmul.f32 %v876, %v860
      %v897 = vmul.f32 %v876, %v861
      %v898 = vmul.f32 %v876, %v862
      %v899 = vmul.f32 %v876, %v863
      %v900 = vmul.f32 %v876, %v864
      %v901 = vmul.f32 %v876, %v865
      %v902 = vmul.f32 %v876, %v866
      %v903 = vmul.f32 %v876, %v867
      %v904 = vmul.f32 %v876, %v868
      %v905 = vmul.f32 %v876, %v869
      %v906 = vmul.f32 %v876, %v870
      %v907 = vmul.f32 %v876, %v871
      %v908 = vmul.f32 %v876, %v872
      %v909 = vadd.f32 %v808, %v877
      %v910 = vadd.f32 %v809, %v878
      %v911 = vadd.f32 %v810, %v879
      %v912 = vadd.f32 %v811, %v880
      %v913 = vadd.f32 %v812, %v881
      %v914 = vadd.f32 %v813, %v882
      %v915 = vadd.f32 %v814, %v883
      %v916 = vadd.f32 %v815, %v884
      %v917 = vadd.f32 %v816, %v885
      %v918 = vadd.f32 %v817, %v886
      %v919 = vadd.f32 %v818, %v887
      %v920 = vadd.f32 %v819, %v888
      %v921 = vadd.f32 %v820, %v889
      %v922 = vadd.f32 %v821, %v890
      %v923 = vadd.f32 %v822, %v891
      %v924 = vadd.f32 %v823, %v892
      %v925 = vadd.f32 %v824, %v893
      %v926 = vadd.f32 %v825, %v894
      %v927 = vadd.f32 %v826, %v895
      %v928 = vadd.f32 %v827, %v896
      %v929 = vadd.f32 %v828, %v897
      %v930 = vadd.f32 %v829, %v898
      %v931 = vadd.f32 %v830, %v899
      %v932 = vadd.f32 %v831, %v900
      %v933 = vadd.f32 %v832, %v901
      %v934 = vadd.f32 %v833, %v902
      %v935 = vadd.f32 %v834, %v903
      %v936 = vadd.f32 %v835, %v904
      %v937 = vadd.f32 %v836, %v905
      %v938 = vadd.f32 %v837, %v906
      %v939 = vadd.f32 %v838, %v907
      %v940 = vadd.f32 %v839, %v908
      %v941 = vld [vmem:[%s297 + $0x5] sm:$0x1]
      %v942 = vld [vmem:[%s403 + $0x2] sm:$0xff]
      %v943 = vld [vmem:[%s403 + $0xa] sm:$0xff]
      %v944 = vld [vmem:[%s403 + $0x1a] sm:$0xff]
      %v945 = vld [vmem:[%s403 + $0x22] sm:$0xff]
      %v946 = vld [vmem:[%s403 + $0x32] sm:$0xff]
      %v947 = vld [vmem:[%s403 + $0x3a] sm:$0xff]
      %v948 = vld [vmem:[%s403 + $0x4a] sm:$0xff]
      %v949 = vld [vmem:[%s403 + $0x52] sm:$0xff]
      %v950 = vld [vmem:[%s403 + $0x62] sm:$0xff]
      %v951 = vld [vmem:[%s403 + $0x6a] sm:$0xff]
      %v952 = vld [vmem:[%s403 + $0x7a] sm:$0xff]
      %v953 = vld [vmem:[%s403 + $0x82] sm:$0xff]
      %v954 = vld [vmem:[%s403 + $0x92] sm:$0xff]
      %v955 = vld [vmem:[%s403 + $0x9a] sm:$0xff]
      %v956 = vld [vmem:[%s403 + $0xaa] sm:$0xff]
      %v957 = vld [vmem:[%s403 + $0xb2] sm:$0xff]
      %v958 = vld [vmem:[%s403 + $0xc2] sm:$0xff]
      %v959 = vld [vmem:[%s403 + $0xca] sm:$0xff]
      %v960 = vld [vmem:[%s403 + $0xda] sm:$0xff]
      %v961 = vld [vmem:[%s403 + $0xe2] sm:$0xff]
      %v962 = vld [vmem:[%s403 + $0xf2] sm:$0xff]
      %v963 = vld [vmem:[%s403 + $0xfa] sm:$0xff]
      %v964 = vld [vmem:[%s403 + $0x10a] sm:$0xff]
      %v965 = vld [vmem:[%s403 + $0x112] sm:$0xff]
      %v966 = vld [vmem:[%s403 + $0x122] sm:$0xff]
      %v967 = vld [vmem:[%s403 + $0x12a] sm:$0xff]
      %v968 = vld [vmem:[%s403 + $0x13a] sm:$0xff]
      %v969 = vld [vmem:[%s403 + $0x142] sm:$0xff]
      %v970 = vld [vmem:[%s403 + $0x152] sm:$0xff]
      %v971 = vld [vmem:[%s403 + $0x15a] sm:$0xff]
      %v972 = vld [vmem:[%s403 + $0x16a] sm:$0xff]
      %v973 = vld [vmem:[%s403 + $0x172] sm:$0xff]
      %v974 = vlaneseq
      %v975 = vshrl.u32 %v974, 7
      %v976 = vsub.s32 0, %v975
      %v977 = vrot.slane %v941, %v976
      %v978 = vmul.f32 %v977, %v942
      %v979 = vmul.f32 %v977, %v943
      %v980 = vmul.f32 %v977, %v944
      %v981 = vmul.f32 %v977, %v945
      %v982 = vmul.f32 %v977, %v946
      %v983 = vmul.f32 %v977, %v947
      %v984 = vmul.f32 %v977, %v948
      %v985 = vmul.f32 %v977, %v949
      %v986 = vmul.f32 %v977, %v950
      %v987 = vmul.f32 %v977, %v951
      %v988 = vmul.f32 %v977, %v952
      %v989 = vmul.f32 %v977, %v953
      %v990 = vmul.f32 %v977, %v954
      %v991 = vmul.f32 %v977, %v955
      %v992 = vmul.f32 %v977, %v956
      %v993 = vmul.f32 %v977, %v957
      %v994 = vmul.f32 %v977, %v958
      %v995 = vmul.f32 %v977, %v959
      %v996 = vmul.f32 %v977, %v960
      %v997 = vmul.f32 %v977, %v961
      %v998 = vmul.f32 %v977, %v962
      %v999 = vmul.f32 %v977, %v963
      %v1000 = vmul.f32 %v977, %v964
      %v1001 = vmul.f32 %v977, %v965
      %v1002 = vmul.f32 %v977, %v966
      %v1003 = vmul.f32 %v977, %v967
      %v1004 = vmul.f32 %v977, %v968
      %v1005 = vmul.f32 %v977, %v969
      %v1006 = vmul.f32 %v977, %v970
      %v1007 = vmul.f32 %v977, %v971
      %v1008 = vmul.f32 %v977, %v972
      %v1009 = vmul.f32 %v977, %v973
      %v1010 = vadd.f32 %v909, %v978
      %v1011 = vadd.f32 %v910, %v979
      %v1012 = vadd.f32 %v911, %v980
      %v1013 = vadd.f32 %v912, %v981
      %v1014 = vadd.f32 %v913, %v982
      %v1015 = vadd.f32 %v914, %v983
      %v1016 = vadd.f32 %v915, %v984
      %v1017 = vadd.f32 %v916, %v985
      %v1018 = vadd.f32 %v917, %v986
      %v1019 = vadd.f32 %v918, %v987
      %v1020 = vadd.f32 %v919, %v988
      %v1021 = vadd.f32 %v920, %v989
      %v1022 = vadd.f32 %v921, %v990
      %v1023 = vadd.f32 %v922, %v991
      %v1024 = vadd.f32 %v923, %v992
      %v1025 = vadd.f32 %v924, %v993
      %v1026 = vadd.f32 %v925, %v994
      %v1027 = vadd.f32 %v926, %v995
      %v1028 = vadd.f32 %v927, %v996
      %v1029 = vadd.f32 %v928, %v997
      %v1030 = vadd.f32 %v929, %v998
      %v1031 = vadd.f32 %v930, %v999
      %v1032 = vadd.f32 %v931, %v1000
      %v1033 = vadd.f32 %v932, %v1001
      %v1034 = vadd.f32 %v933, %v1002
      %v1035 = vadd.f32 %v934, %v1003
      %v1036 = vadd.f32 %v935, %v1004
      %v1037 = vadd.f32 %v936, %v1005
      %v1038 = vadd.f32 %v937, %v1006
      %v1039 = vadd.f32 %v938, %v1007
      %v1040 = vadd.f32 %v939, %v1008
      %v1041 = vadd.f32 %v940, %v1009
      %v1042 = vld [vmem:[%s297 + $0x6] sm:$0x1]
      %s1043 = scalar_lea.vmem [#allocation2], 48
      %v1044 = vld [vmem:[%s1043] sm:$0xff]
      %v1045 = vld [vmem:[%s1043 + $0x8] sm:$0xff]
      %v1046 = vld [vmem:[%s1043 + $0x18] sm:$0xff]
      %v1047 = vld [vmem:[%s1043 + $0x20] sm:$0xff]
      %v1048 = vld [vmem:[%s1043 + $0x30] sm:$0xff]
      %v1049 = vld [vmem:[%s1043 + $0x38] sm:$0xff]
      %v1050 = vld [vmem:[%s1043 + $0x48] sm:$0xff]
      %v1051 = vld [vmem:[%s1043 + $0x50] sm:$0xff]
      %v1052 = vld [vmem:[%s1043 + $0x60] sm:$0xff]
      %v1053 = vld [vmem:[%s1043 + $0x68] sm:$0xff]
      %v1054 = vld [vmem:[%s1043 + $0x78] sm:$0xff]
      %v1055 = vld [vmem:[%s1043 + $0x80] sm:$0xff]
      %v1056 = vld [vmem:[%s1043 + $0x90] sm:$0xff]
      %v1057 = vld [vmem:[%s1043 + $0x98] sm:$0xff]
      %v1058 = vld [vmem:[%s1043 + $0xa8] sm:$0xff]
      %v1059 = vld [vmem:[%s1043 + $0xb0] sm:$0xff]
      %v1060 = vld [vmem:[%s1043 + $0xc0] sm:$0xff]
      %v1061 = vld [vmem:[%s1043 + $0xc8] sm:$0xff]
      %v1062 = vld [vmem:[%s1043 + $0xd8] sm:$0xff]
      %v1063 = vld [vmem:[%s1043 + $0xe0] sm:$0xff]
      %v1064 = vld [vmem:[%s1043 + $0xf0] sm:$0xff]
      %v1065 = vld [vmem:[%s1043 + $0xf8] sm:$0xff]
      %v1066 = vld [vmem:[%s1043 + $0x108] sm:$0xff]
      %v1067 = vld [vmem:[%s1043 + $0x110] sm:$0xff]
      %v1068 = vld [vmem:[%s1043 + $0x120] sm:$0xff]
      %v1069 = vld [vmem:[%s1043 + $0x128] sm:$0xff]
      %v1070 = vld [vmem:[%s1043 + $0x138] sm:$0xff]
      %v1071 = vld [vmem:[%s1043 + $0x140] sm:$0xff]
      %v1072 = vld [vmem:[%s1043 + $0x150] sm:$0xff]
      %v1073 = vld [vmem:[%s1043 + $0x158] sm:$0xff]
      %v1074 = vld [vmem:[%s1043 + $0x168] sm:$0xff]
      %v1075 = vld [vmem:[%s1043 + $0x170] sm:$0xff]
      %v1076 = vlaneseq
      %v1077 = vshrl.u32 %v1076, 7
      %v1078 = vsub.s32 0, %v1077
      %v1079 = vrot.slane %v1042, %v1078
      %v1080 = vmul.f32 %v1079, %v1044
      %v1081 = vmul.f32 %v1079, %v1045
      %v1082 = vmul.f32 %v1079, %v1046
      %v1083 = vmul.f32 %v1079, %v1047
      %v1084 = vmul.f32 %v1079, %v1048
      %v1085 = vmul.f32 %v1079, %v1049
      %v1086 = vmul.f32 %v1079, %v1050
      %v1087 = vmul.f32 %v1079, %v1051
      %v1088 = vmul.f32 %v1079, %v1052
      %v1089 = vmul.f32 %v1079, %v1053
      %v1090 = vmul.f32 %v1079, %v1054
      %v1091 = vmul.f32 %v1079, %v1055
      %v1092 = vmul.f32 %v1079, %v1056
      %v1093 = vmul.f32 %v1079, %v1057
      %v1094 = vmul.f32 %v1079, %v1058
      %v1095 = vmul.f32 %v1079, %v1059
      %v1096 = vmul.f32 %v1079, %v1060
      %v1097 = vmul.f32 %v1079, %v1061
      %v1098 = vmul.f32 %v1079, %v1062
      %v1099 = vmul.f32 %v1079, %v1063
      %v1100 = vmul.f32 %v1079, %v1064
      %v1101 = vmul.f32 %v1079, %v1065
      %v1102 = vmul.f32 %v1079, %v1066
      %v1103 = vmul.f32 %v1079, %v1067
      %v1104 = vmul.f32 %v1079, %v1068
      %v1105 = vmul.f32 %v1079, %v1069
      %v1106 = vmul.f32 %v1079, %v1070
      %v1107 = vmul.f32 %v1079, %v1071
      %v1108 = vmul.f32 %v1079, %v1072
      %v1109 = vmul.f32 %v1079, %v1073
      %v1110 = vmul.f32 %v1079, %v1074
      %v1111 = vmul.f32 %v1079, %v1075
      %v1112 = vadd.f32 %v1010, %v1080
      %v1113 = vadd.f32 %v1011, %v1081
      %v1114 = vadd.f32 %v1012, %v1082
      %v1115 = vadd.f32 %v1013, %v1083
      %v1116 = vadd.f32 %v1014, %v1084
      %v1117 = vadd.f32 %v1015, %v1085
      %v1118 = vadd.f32 %v1016, %v1086
      %v1119 = vadd.f32 %v1017, %v1087
      %v1120 = vadd.f32 %v1018, %v1088
      %v1121 = vadd.f32 %v1019, %v1089
      %v1122 = vadd.f32 %v1020, %v1090
      %v1123 = vadd.f32 %v1021, %v1091
      %v1124 = vadd.f32 %v1022, %v1092
      %v1125 = vadd.f32 %v1023, %v1093
      %v1126 = vadd.f32 %v1024, %v1094
      %v1127 = vadd.f32 %v1025, %v1095
      %v1128 = vadd.f32 %v1026, %v1096
      %v1129 = vadd.f32 %v1027, %v1097
      %v1130 = vadd.f32 %v1028, %v1098
      %v1131 = vadd.f32 %v1029, %v1099
      %v1132 = vadd.f32 %v1030, %v1100
      %v1133 = vadd.f32 %v1031, %v1101
      %v1134 = vadd.f32 %v1032, %v1102
      %v1135 = vadd.f32 %v1033, %v1103
      %v1136 = vadd.f32 %v1034, %v1104
      %v1137 = vadd.f32 %v1035, %v1105
      %v1138 = vadd.f32 %v1036, %v1106
      %v1139 = vadd.f32 %v1037, %v1107
      %v1140 = vadd.f32 %v1038, %v1108
      %v1141 = vadd.f32 %v1039, %v1109
      %v1142 = vadd.f32 %v1040, %v1110
      %v1143 = vadd.f32 %v1041, %v1111
      %v1144 = vld [vmem:[%s297 + $0x7] sm:$0x1]
      %v1145 = vld [vmem:[%s1043 + $0x1] sm:$0xff]
      %v1146 = vld [vmem:[%s1043 + $0x9] sm:$0xff]
      %v1147 = vld [vmem:[%s1043 + $0x19] sm:$0xff]
      %v1148 = vld [vmem:[%s1043 + $0x21] sm:$0xff]
      %v1149 = vld [vmem:[%s1043 + $0x31] sm:$0xff]
      %v1150 = vld [vmem:[%s1043 + $0x39] sm:$0xff]
      %v1151 = vld [vmem:[%s1043 + $0x49] sm:$0xff]
      %v1152 = vld [vmem:[%s1043 + $0x51] sm:$0xff]
      %v1153 = vld [vmem:[%s1043 + $0x61] sm:$0xff]
      %v1154 = vld [vmem:[%s1043 + $0x69] sm:$0xff]
      %v1155 = vld [vmem:[%s1043 + $0x79] sm:$0xff]
      %v1156 = vld [vmem:[%s1043 + $0x81] sm:$0xff]
      %v1157 = vld [vmem:[%s1043 + $0x91] sm:$0xff]
      %v1158 = vld [vmem:[%s1043 + $0x99] sm:$0xff]
      %v1159 = vld [vmem:[%s1043 + $0xa9] sm:$0xff]
      %v1160 = vld [vmem:[%s1043 + $0xb1] sm:$0xff]
      %v1161 = vld [vmem:[%s1043 + $0xc1] sm:$0xff]
      %v1162 = vld [vmem:[%s1043 + $0xc9] sm:$0xff]
      %v1163 = vld [vmem:[%s1043 + $0xd9] sm:$0xff]
      %v1164 = vld [vmem:[%s1043 + $0xe1] sm:$0xff]
      %v1165 = vld [vmem:[%s1043 + $0xf1] sm:$0xff]
      %v1166 = vld [vmem:[%s1043 + $0xf9] sm:$0xff]
      %v1167 = vld [vmem:[%s1043 + $0x109] sm:$0xff]
      %v1168 = vld [vmem:[%s1043 + $0x111] sm:$0xff]
      %v1169 = vld [vmem:[%s1043 + $0x121] sm:$0xff]
      %v1170 = vld [vmem:[%s1043 + $0x129] sm:$0xff]
      %v1171 = vld [vmem:[%s1043 + $0x139] sm:$0xff]
      %v1172 = vld [vmem:[%s1043 + $0x141] sm:$0xff]
      %v1173 = vld [vmem:[%s1043 + $0x151] sm:$0xff]
      %v1174 = vld [vmem:[%s1043 + $0x159] sm:$0xff]
      %v1175 = vld [vmem:[%s1043 + $0x169] sm:$0xff]
      %v1176 = vld [vmem:[%s1043 + $0x171] sm:$0xff]
      %v1177 = vlaneseq
      %v1178 = vshrl.u32 %v1177, 7
      %v1179 = vsub.s32 0, %v1178
      %v1180 = vrot.slane %v1144, %v1179
      %v1181 = vmul.f32 %v1180, %v1145
      %v1182 = vmul.f32 %v1180, %v1146
      %v1183 = vmul.f32 %v1180, %v1147
      %v1184 = vmul.f32 %v1180, %v1148
      %v1185 = vmul.f32 %v1180, %v1149
      %v1186 = vmul.f32 %v1180, %v1150
      %v1187 = vmul.f32 %v1180, %v1151
      %v1188 = vmul.f32 %v1180, %v1152
      %v1189 = vmul.f32 %v1180, %v1153
      %v1190 = vmul.f32 %v1180, %v1154
      %v1191 = vmul.f32 %v1180, %v1155
      %v1192 = vmul.f32 %v1180, %v1156
      %v1193 = vmul.f32 %v1180, %v1157
      %v1194 = vmul.f32 %v1180, %v1158
      %v1195 = vmul.f32 %v1180, %v1159
      %v1196 = vmul.f32 %v1180, %v1160
      %v1197 = vmul.f32 %v1180, %v1161
      %v1198 = vmul.f32 %v1180, %v1162
      %v1199 = vmul.f32 %v1180, %v1163
      %v1200 = vmul.f32 %v1180, %v1164
      %v1201 = vmul.f32 %v1180, %v1165
      %v1202 = vmul.f32 %v1180, %v1166
      %v1203 = vmul.f32 %v1180, %v1167
      %v1204 = vmul.f32 %v1180, %v1168
      %v1205 = vmul.f32 %v1180, %v1169
      %v1206 = vmul.f32 %v1180, %v1170
      %v1207 = vmul.f32 %v1180, %v1171
      %v1208 = vmul.f32 %v1180, %v1172
      %v1209 = vmul.f32 %v1180, %v1173
      %v1210 = vmul.f32 %v1180, %v1174
      %v1211 = vmul.f32 %v1180, %v1175
      %v1212 = vmul.f32 %v1180, %v1176
      %v1213 = vadd.f32 %v1112, %v1181
      %v1214 = vadd.f32 %v1113, %v1182
      %v1215 = vadd.f32 %v1114, %v1183
      %v1216 = vadd.f32 %v1115, %v1184
      %v1217 = vadd.f32 %v1116, %v1185
      %v1218 = vadd.f32 %v1117, %v1186
      %v1219 = vadd.f32 %v1118, %v1187
      %v1220 = vadd.f32 %v1119, %v1188
      %v1221 = vadd.f32 %v1120, %v1189
      %v1222 = vadd.f32 %v1121, %v1190
      %v1223 = vadd.f32 %v1122, %v1191
      %v1224 = vadd.f32 %v1123, %v1192
      %v1225 = vadd.f32 %v1124, %v1193
      %v1226 = vadd.f32 %v1125, %v1194
      %v1227 = vadd.f32 %v1126, %v1195
      %v1228 = vadd.f32 %v1127, %v1196
      %v1229 = vadd.f32 %v1128, %v1197
      %v1230 = vadd.f32 %v1129, %v1198
      %v1231 = vadd.f32 %v1130, %v1199
      %v1232 = vadd.f32 %v1131, %v1200
      %v1233 = vadd.f32 %v1132, %v1201
      %v1234 = vadd.f32 %v1133, %v1202
      %v1235 = vadd.f32 %v1134, %v1203
      %v1236 = vadd.f32 %v1135, %v1204
      %v1237 = vadd.f32 %v1136, %v1205
      %v1238 = vadd.f32 %v1137, %v1206
      %v1239 = vadd.f32 %v1138, %v1207
      %v1240 = vadd.f32 %v1139, %v1208
      %v1241 = vadd.f32 %v1140, %v1209
      %v1242 = vadd.f32 %v1141, %v1210
      %v1243 = vadd.f32 %v1142, %v1211
      %v1244 = vadd.f32 %v1143, %v1212
      %v1245 = vld [vmem:[%s297 + $0x8] sm:$0x1]
      %v1246 = vld [vmem:[%s1043 + $0x2] sm:$0xff]
      %v1247 = vld [vmem:[%s1043 + $0xa] sm:$0xff]
      %v1248 = vld [vmem:[%s1043 + $0x1a] sm:$0xff]
      %v1249 = vld [vmem:[%s1043 + $0x22] sm:$0xff]
      %v1250 = vld [vmem:[%s1043 + $0x32] sm:$0xff]
      %v1251 = vld [vmem:[%s1043 + $0x3a] sm:$0xff]
      %v1252 = vld [vmem:[%s1043 + $0x4a] sm:$0xff]
      %v1253 = vld [vmem:[%s1043 + $0x52] sm:$0xff]
      %v1254 = vld [vmem:[%s1043 + $0x62] sm:$0xff]
      %v1255 = vld [vmem:[%s1043 + $0x6a] sm:$0xff]
      %v1256 = vld [vmem:[%s1043 + $0x7a] sm:$0xff]
      %v1257 = vld [vmem:[%s1043 + $0x82] sm:$0xff]
      %v1258 = vld [vmem:[%s1043 + $0x92] sm:$0xff]
      %v1259 = vld [vmem:[%s1043 + $0x9a] sm:$0xff]
      %v1260 = vld [vmem:[%s1043 + $0xaa] sm:$0xff]
      %v1261 = vld [vmem:[%s1043 + $0xb2] sm:$0xff]
      %v1262 = vld [vmem:[%s1043 + $0xc2] sm:$0xff]
      %v1263 = vld [vmem:[%s1043 + $0xca] sm:$0xff]
      %v1264 = vld [vmem:[%s1043 + $0xda] sm:$0xff]
      %v1265 = vld [vmem:[%s1043 + $0xe2] sm:$0xff]
      %v1266 = vld [vmem:[%s1043 + $0xf2] sm:$0xff]
      %v1267 = vld [vmem:[%s1043 + $0xfa] sm:$0xff]
      %v1268 = vld [vmem:[%s1043 + $0x10a] sm:$0xff]
      %v1269 = vld [vmem:[%s1043 + $0x112] sm:$0xff]
      %v1270 = vld [vmem:[%s1043 + $0x122] sm:$0xff]
      %v1271 = vld [vmem:[%s1043 + $0x12a] sm:$0xff]
      %v1272 = vld [vmem:[%s1043 + $0x13a] sm:$0xff]
      %v1273 = vld [vmem:[%s1043 + $0x142] sm:$0xff]
      %v1274 = vld [vmem:[%s1043 + $0x152] sm:$0xff]
      %v1275 = vld [vmem:[%s1043 + $0x15a] sm:$0xff]
      %v1276 = vld [vmem:[%s1043 + $0x16a] sm:$0xff]
      %v1277 = vld [vmem:[%s1043 + $0x172] sm:$0xff]
      %v1278 = vlaneseq
      %v1279 = vshrl.u32 %v1278, 7
      %v1280 = vsub.s32 0, %v1279
      %v1281 = vrot.slane %v1245, %v1280
      %v1282 = vmul.f32 %v1281, %v1246
      %v1283 = vmul.f32 %v1281, %v1247
      %v1284 = vmul.f32 %v1281, %v1248
      %v1285 = vmul.f32 %v1281, %v1249
      %v1286 = vmul.f32 %v1281, %v1250
      %v1287 = vmul.f32 %v1281, %v1251
      %v1288 = vmul.f32 %v1281, %v1252
      %v1289 = vmul.f32 %v1281, %v1253
      %v1290 = vmul.f32 %v1281, %v1254
      %v1291 = vmul.f32 %v1281, %v1255
      %v1292 = vmul.f32 %v1281, %v1256
      %v1293 = vmul.f32 %v1281, %v1257
      %v1294 = vmul.f32 %v1281, %v1258
      %v1295 = vmul.f32 %v1281, %v1259
      %v1296 = vmul.f32 %v1281, %v1260
      %v1297 = vmul.f32 %v1281, %v1261
      %v1298 = vmul.f32 %v1281, %v1262
      %v1299 = vmul.f32 %v1281, %v1263
      %v1300 = vmul.f32 %v1281, %v1264
      %v1301 = vmul.f32 %v1281, %v1265
      %v1302 = vmul.f32 %v1281, %v1266
      %v1303 = vmul.f32 %v1281, %v1267
      %v1304 = vmul.f32 %v1281, %v1268
      %v1305 = vmul.f32 %v1281, %v1269
      %v1306 = vmul.f32 %v1281, %v1270
      %v1307 = vmul.f32 %v1281, %v1271
      %v1308 = vmul.f32 %v1281, %v1272
      %v1309 = vmul.f32 %v1281, %v1273
      %v1310 = vmul.f32 %v1281, %v1274
      %v1311 = vmul.f32 %v1281, %v1275
      %v1312 = vmul.f32 %v1281, %v1276
      %v1313 = vmul.f32 %v1281, %v1277
      %v1314 = vadd.f32 %v1213, %v1282
      %v1315 = vadd.f32 %v1214, %v1283
      %v1316 = vadd.f32 %v1215, %v1284
      %v1317 = vadd.f32 %v1216, %v1285
      %v1318 = vadd.f32 %v1217, %v1286
      %v1319 = vadd.f32 %v1218, %v1287
      %v1320 = vadd.f32 %v1219, %v1288
      %v1321 = vadd.f32 %v1220, %v1289
      %v1322 = vadd.f32 %v1221, %v1290
      %v1323 = vadd.f32 %v1222, %v1291
      %v1324 = vadd.f32 %v1223, %v1292
      %v1325 = vadd.f32 %v1224, %v1293
      %v1326 = vadd.f32 %v1225, %v1294
      %v1327 = vadd.f32 %v1226, %v1295
      %v1328 = vadd.f32 %v1227, %v1296
      %v1329 = vadd.f32 %v1228, %v1297
      %v1330 = vadd.f32 %v1229, %v1298
      %v1331 = vadd.f32 %v1230, %v1299
      %v1332 = vadd.f32 %v1231, %v1300
      %v1333 = vadd.f32 %v1232, %v1301
      %v1334 = vadd.f32 %v1233, %v1302
      %v1335 = vadd.f32 %v1234, %v1303
      %v1336 = vadd.f32 %v1235, %v1304
      %v1337 = vadd.f32 %v1236, %v1305
      %v1338 = vadd.f32 %v1237, %v1306
      %v1339 = vadd.f32 %v1238, %v1307
      %v1340 = vadd.f32 %v1239, %v1308
      %v1341 = vadd.f32 %v1240, %v1309
      %v1342 = vadd.f32 %v1241, %v1310
      %v1343 = vadd.f32 %v1242, %v1311
      %v1344 = vadd.f32 %v1243, %v1312
      %v1345 = vadd.f32 %v1244, %v1313
      %v1346 = vld [vmem:[%s300] sm:$0x1]
      %v1348 = vlaneseq
      %v1349 = vshrl.u32 %v1348, 7
      %v1350 = vsub.s32 0, %v1349
      %v1351 = vrot.slane %v1346, %v1350
      %v1353 = vadd.f32 %v1314, %v1351
      %v1354 = vadd.f32 %v1315, %v1351
      %v1355 = vadd.f32 %v1316, %v1351
      %v1356 = vadd.f32 %v1317, %v1351
      %v1357 = vadd.f32 %v1318, %v1351
      %v1358 = vadd.f32 %v1319, %v1351
      %v1359 = vadd.f32 %v1320, %v1351
      %v1360 = vadd.f32 %v1321, %v1351
      %v1361 = vadd.f32 %v1322, %v1351
      %v1362 = vadd.f32 %v1323, %v1351
      %v1363 = vadd.f32 %v1324, %v1351
      %v1364 = vadd.f32 %v1325, %v1351
      %v1365 = vadd.f32 %v1326, %v1351
      %v1366 = vadd.f32 %v1327, %v1351
      %v1367 = vadd.f32 %v1328, %v1351
      %v1368 = vadd.f32 %v1329, %v1351
      %v1369 = vadd.f32 %v1330, %v1351
      %v1370 = vadd.f32 %v1331, %v1351
      %v1371 = vadd.f32 %v1332, %v1351
      %v1372 = vadd.f32 %v1333, %v1351
      %v1373 = vadd.f32 %v1334, %v1351
      %v1374 = vadd.f32 %v1335, %v1351
      %v1375 = vadd.f32 %v1336, %v1351
      %v1376 = vadd.f32 %v1337, %v1351
      %v1377 = vadd.f32 %v1338, %v1351
      %v1378 = vadd.f32 %v1339, %v1351
      %v1379 = vadd.f32 %v1340, %v1351
      %v1380 = vadd.f32 %v1341, %v1351
      %v1381 = vadd.f32 %v1342, %v1351
      %v1382 = vadd.f32 %v1343, %v1351
      %v1383 = vadd.f32 %v1344, %v1351
      %v1384 = vadd.f32 %v1345, %v1351
      %v1385 = vmul.f32 %v1353, %v1353
      %v1386 = vmul.f32 %v1354, %v1354
      %v1387 = vmul.f32 %v1355, %v1355
      %v1388 = vmul.f32 %v1356, %v1356
      %v1389 = vmul.f32 %v1357, %v1357
      %v1390 = vmul.f32 %v1358, %v1358
      %v1391 = vmul.f32 %v1359, %v1359
      %v1392 = vmul.f32 %v1360, %v1360
      %v1393 = vmul.f32 %v1361, %v1361
      %v1394 = vmul.f32 %v1362, %v1362
      %v1395 = vmul.f32 %v1363, %v1363
      %v1396 = vmul.f32 %v1364, %v1364
      %v1397 = vmul.f32 %v1365, %v1365
      %v1398 = vmul.f32 %v1366, %v1366
      %v1399 = vmul.f32 %v1367, %v1367
      %v1400 = vmul.f32 %v1368, %v1368
      %v1401 = vmul.f32 %v1369, %v1369
      %v1402 = vmul.f32 %v1370, %v1370
      %v1403 = vmul.f32 %v1371, %v1371
      %v1404 = vmul.f32 %v1372, %v1372
      %v1405 = vmul.f32 %v1373, %v1373
      %v1406 = vmul.f32 %v1374, %v1374
      %v1407 = vmul.f32 %v1375, %v1375
      %v1408 = vmul.f32 %v1376, %v1376
      %v1409 = vmul.f32 %v1377, %v1377
      %v1410 = vmul.f32 %v1378, %v1378
      %v1411 = vmul.f32 %v1379, %v1379
      %v1412 = vmul.f32 %v1380, %v1380
      %v1413 = vmul.f32 %v1381, %v1381
      %v1414 = vmul.f32 %v1382, %v1382
      %v1415 = vmul.f32 %v1383, %v1383
      %v1416 = vmul.f32 %v1384, %v1384
      %v1417 = vmul.f32 %v1353, %v1385
      %v1418 = vmul.f32 %v1354, %v1386
      %v1419 = vmul.f32 %v1355, %v1387
      %v1420 = vmul.f32 %v1356, %v1388
      %v1421 = vmul.f32 %v1357, %v1389
      %v1422 = vmul.f32 %v1358, %v1390
      %v1423 = vmul.f32 %v1359, %v1391
      %v1424 = vmul.f32 %v1360, %v1392
      %v1425 = vmul.f32 %v1361, %v1393
      %v1426 = vmul.f32 %v1362, %v1394
      %v1427 = vmul.f32 %v1363, %v1395
      %v1428 = vmul.f32 %v1364, %v1396
      %v1429 = vmul.f32 %v1365, %v1397
      %v1430 = vmul.f32 %v1366, %v1398
      %v1431 = vmul.f32 %v1367, %v1399
      %v1432 = vmul.f32 %v1368, %v1400
      %v1433 = vmul.f32 %v1369, %v1401
      %v1434 = vmul.f32 %v1370, %v1402
      %v1435 = vmul.f32 %v1371, %v1403
      %v1436 = vmul.f32 %v1372, %v1404
      %v1437 = vmul.f32 %v1373, %v1405
      %v1438 = vmul.f32 %v1374, %v1406
      %v1439 = vmul.f32 %v1375, %v1407
      %v1440 = vmul.f32 %v1376, %v1408
      %v1441 = vmul.f32 %v1377, %v1409
      %v1442 = vmul.f32 %v1378, %v1410
      %v1443 = vmul.f32 %v1379, %v1411
      %v1444 = vmul.f32 %v1380, %v1412
      %v1445 = vmul.f32 %v1381, %v1413
      %v1446 = vmul.f32 %v1382, %v1414
      %v1447 = vmul.f32 %v1383, %v1415
      %v1448 = vmul.f32 %v1384, %v1416
      %v1449 = vmul.f32 %v1417, 0.044715
      %v1450 = vmul.f32 %v1418, 0.044715
      %v1451 = vmul.f32 %v1419, 0.044715
      %v1452 = vmul.f32 %v1420, 0.044715
      %v1453 = vmul.f32 %v1421, 0.044715
      %v1454 = vmul.f32 %v1422, 0.044715
      %v1455 = vmul.f32 %v1423, 0.044715
      %v1456 = vmul.f32 %v1424, 0.044715
      %v1457 = vmul.f32 %v1425, 0.044715
      %v1458 = vmul.f32 %v1426, 0.044715
      %v1459 = vmul.f32 %v1427, 0.044715
      %v1460 = vmul.f32 %v1428, 0.044715
      %v1461 = vmul.f32 %v1429, 0.044715
      %v1462 = vmul.f32 %v1430, 0.044715
      %v1463 = vmul.f32 %v1431, 0.044715
      %v1464 = vmul.f32 %v1432, 0.044715
      %v1465 = vmul.f32 %v1433, 0.044715
      %v1466 = vmul.f32 %v1434, 0.044715
      %v1467 = vmul.f32 %v1435, 0.044715
      %v1468 = vmul.f32 %v1436, 0.044715
      %v1469 = vmul.f32 %v1437, 0.044715
      %v1470 = vmul.f32 %v1438, 0.044715
      %v1471 = vmul.f32 %v1439, 0.044715
      %v1472 = vmul.f32 %v1440, 0.044715
      %v1473 = vmul.f32 %v1441, 0.044715
      %v1474 = vmul.f32 %v1442, 0.044715
      %v1475 = vmul.f32 %v1443, 0.044715
      %v1476 = vmul.f32 %v1444, 0.044715
      %v1477 = vmul.f32 %v1445, 0.044715
      %v1478 = vmul.f32 %v1446, 0.044715
      %v1479 = vmul.f32 %v1447, 0.044715
      %v1480 = vmul.f32 %v1448, 0.044715
      %v1481 = vadd.f32 %v1353, %v1449
      %v1482 = vadd.f32 %v1354, %v1450
      %v1483 = vadd.f32 %v1355, %v1451
      %v1484 = vadd.f32 %v1356, %v1452
      %v1485 = vadd.f32 %v1357, %v1453
      %v1486 = vadd.f32 %v1358, %v1454
      %v1487 = vadd.f32 %v1359, %v1455
      %v1488 = vadd.f32 %v1360, %v1456
      %v1489 = vadd.f32 %v1361, %v1457
      %v1490 = vadd.f32 %v1362, %v1458
      %v1491 = vadd.f32 %v1363, %v1459
      %v1492 = vadd.f32 %v1364, %v1460
      %v1493 = vadd.f32 %v1365, %v1461
      %v1494 = vadd.f32 %v1366, %v1462
      %v1495 = vadd.f32 %v1367, %v1463
      %v1496 = vadd.f32 %v1368, %v1464
      %v1497 = vadd.f32 %v1369, %v1465
      %v1498 = vadd.f32 %v1370, %v1466
      %v1499 = vadd.f32 %v1371, %v1467
      %v1500 = vadd.f32 %v1372, %v1468
      %v1501 = vadd.f32 %v1373, %v1469
      %v1502 = vadd.f32 %v1374, %v1470
      %v1503 = vadd.f32 %v1375, %v1471
      %v1504 = vadd.f32 %v1376, %v1472
      %v1505 = vadd.f32 %v1377, %v1473
      %v1506 = vadd.f32 %v1378, %v1474
      %v1507 = vadd.f32 %v1379, %v1475
      %v1508 = vadd.f32 %v1380, %v1476
      %v1509 = vadd.f32 %v1381, %v1477
      %v1510 = vadd.f32 %v1382, %v1478
      %v1511 = vadd.f32 %v1383, %v1479
      %v1512 = vadd.f32 %v1384, %v1480
      %v1513 = vmul.f32 %v1481, 0.7978846
      %v1514 = vmul.f32 %v1482, 0.7978846
      %v1515 = vmul.f32 %v1483, 0.7978846
      %v1516 = vmul.f32 %v1484, 0.7978846
      %v1517 = vmul.f32 %v1485, 0.7978846
      %v1518 = vmul.f32 %v1486, 0.7978846
      %v1519 = vmul.f32 %v1487, 0.7978846
      %v1520 = vmul.f32 %v1488, 0.7978846
      %v1521 = vmul.f32 %v1489, 0.7978846
      %v1522 = vmul.f32 %v1490, 0.7978846
      %v1523 = vmul.f32 %v1491, 0.7978846
      %v1524 = vmul.f32 %v1492, 0.7978846
      %v1525 = vmul.f32 %v1493, 0.7978846
      %v1526 = vmul.f32 %v1494, 0.7978846
      %v1527 = vmul.f32 %v1495, 0.7978846
      %v1528 = vmul.f32 %v1496, 0.7978846
      %v1529 = vmul.f32 %v1497, 0.7978846
      %v1530 = vmul.f32 %v1498, 0.7978846
      %v1531 = vmul.f32 %v1499, 0.7978846
      %v1532 = vmul.f32 %v1500, 0.7978846
      %v1533 = vmul.f32 %v1501, 0.7978846
      %v1534 = vmul.f32 %v1502, 0.7978846
      %v1535 = vmul.f32 %v1503, 0.7978846
      %v1536 = vmul.f32 %v1504, 0.7978846
      %v1537 = vmul.f32 %v1505, 0.7978846
      %v1538 = vmul.f32 %v1506, 0.7978846
      %v1539 = vmul.f32 %v1507, 0.7978846
      %v1540 = vmul.f32 %v1508, 0.7978846
      %v1541 = vmul.f32 %v1509, 0.7978846
      %v1542 = vmul.f32 %v1510, 0.7978846
      %v1543 = vmul.f32 %v1511, 0.7978846
      %v1544 = vmul.f32 %v1512, 0.7978846
      %v1545 = vtanh.pop %v1513
      %v1546 = vtanh.pop %v1514
      %v1547 = vtanh.pop %v1515
      %v1548 = vtanh.pop %v1516
      %v1549 = vtanh.pop %v1517
      %v1550 = vtanh.pop %v1518
      %v1551 = vtanh.pop %v1519
      %v1552 = vtanh.pop %v1520
      %v1553 = vtanh.pop %v1521
      %v1554 = vtanh.pop %v1522
      %v1555 = vtanh.pop %v1523
      %v1556 = vtanh.pop %v1524
      %v1557 = vtanh.pop %v1525
      %v1558 = vtanh.pop %v1526
      %v1559 = vtanh.pop %v1527
      %v1560 = vtanh.pop %v1528
      %v1561 = vtanh.pop %v1529
      %v1562 = vtanh.pop %v1530
      %v1563 = vtanh.pop %v1531
      %v1564 = vtanh.pop %v1532
      %v1565 = vtanh.pop %v1533
      %v1566 = vtanh.pop %v1534
      %v1567 = vtanh.pop %v1535
      %v1568 = vtanh.pop %v1536
      %v1569 = vtanh.pop %v1537
      %v1570 = vtanh.pop %v1538
      %v1571 = vtanh.pop %v1539
      %v1572 = vtanh.pop %v1540
      %v1573 = vtanh.pop %v1541
      %v1574 = vtanh.pop %v1542
      %v1575 = vtanh.pop %v1543
      %v1576 = vtanh.pop %v1544
      %v1577 = vadd.f32 %v1545, 1.0
      %v1578 = vadd.f32 %v1546, 1.0
      %v1579 = vadd.f32 %v1547, 1.0
      %v1580 = vadd.f32 %v1548, 1.0
      %v1581 = vadd.f32 %v1549, 1.0
      %v1582 = vadd.f32 %v1550, 1.0
      %v1583 = vadd.f32 %v1551, 1.0
      %v1584 = vadd.f32 %v1552, 1.0
      %v1585 = vadd.f32 %v1553, 1.0
      %v1586 = vadd.f32 %v1554, 1.0
      %v1587 = vadd.f32 %v1555, 1.0
      %v1588 = vadd.f32 %v1556, 1.0
      %v1589 = vadd.f32 %v1557, 1.0
      %v1590 = vadd.f32 %v1558, 1.0
      %v1591 = vadd.f32 %v1559, 1.0
      %v1592 = vadd.f32 %v1560, 1.0
      %v1593 = vadd.f32 %v1561, 1.0
      %v1594 = vadd.f32 %v1562, 1.0
      %v1595 = vadd.f32 %v1563, 1.0
      %v1596 = vadd.f32 %v1564, 1.0
      %v1597 = vadd.f32 %v1565, 1.0
      %v1598 = vadd.f32 %v1566, 1.0
      %v1599 = vadd.f32 %v1567, 1.0
      %v1600 = vadd.f32 %v1568, 1.0
      %v1601 = vadd.f32 %v1569, 1.0
      %v1602 = vadd.f32 %v1570, 1.0
      %v1603 = vadd.f32 %v1571, 1.0
      %v1604 = vadd.f32 %v1572, 1.0
      %v1605 = vadd.f32 %v1573, 1.0
      %v1606 = vadd.f32 %v1574, 1.0
      %v1607 = vadd.f32 %v1575, 1.0
      %v1608 = vadd.f32 %v1576, 1.0
      %v1609 = vmul.f32 %v1577, 0.5
      %v1610 = vmul.f32 %v1578, 0.5
      %v1611 = vmul.f32 %v1579, 0.5
      %v1612 = vmul.f32 %v1580, 0.5
      %v1613 = vmul.f32 %v1581, 0.5
      %v1614 = vmul.f32 %v1582, 0.5
      %v1615 = vmul.f32 %v1583, 0.5
      %v1616 = vmul.f32 %v1584, 0.5
      %v1617 = vmul.f32 %v1585, 0.5
      %v1618 = vmul.f32 %v1586, 0.5
      %v1619 = vmul.f32 %v1587, 0.5
      %v1620 = vmul.f32 %v1588, 0.5
      %v1621 = vmul.f32 %v1589, 0.5
      %v1622 = vmul.f32 %v1590, 0.5
      %v1623 = vmul.f32 %v1591, 0.5
      %v1624 = vmul.f32 %v1592, 0.5
      %v1625 = vmul.f32 %v1593, 0.5
      %v1626 = vmul.f32 %v1594, 0.5
      %v1627 = vmul.f32 %v1595, 0.5
      %v1628 = vmul.f32 %v1596, 0.5
      %v1629 = vmul.f32 %v1597, 0.5
      %v1630 = vmul.f32 %v1598, 0.5
      %v1631 = vmul.f32 %v1599, 0.5
      %v1632 = vmul.f32 %v1600, 0.5
      %v1633 = vmul.f32 %v1601, 0.5
      %v1634 = vmul.f32 %v1602, 0.5
      %v1635 = vmul.f32 %v1603, 0.5
      %v1636 = vmul.f32 %v1604, 0.5
      %v1637 = vmul.f32 %v1605, 0.5
      %v1638 = vmul.f32 %v1606, 0.5
      %v1639 = vmul.f32 %v1607, 0.5
      %v1640 = vmul.f32 %v1608, 0.5
      %v1641 = vmul.f32 %v1353, %v1609
      %v1642 = vmul.f32 %v1354, %v1610
      %v1643 = vmul.f32 %v1355, %v1611
      %v1644 = vmul.f32 %v1356, %v1612
      %v1645 = vmul.f32 %v1357, %v1613
      %v1646 = vmul.f32 %v1358, %v1614
      %v1647 = vmul.f32 %v1359, %v1615
      %v1648 = vmul.f32 %v1360, %v1616
      %v1649 = vmul.f32 %v1361, %v1617
      %v1650 = vmul.f32 %v1362, %v1618
      %v1651 = vmul.f32 %v1363, %v1619
      %v1652 = vmul.f32 %v1364, %v1620
      %v1653 = vmul.f32 %v1365, %v1621
      %v1654 = vmul.f32 %v1366, %v1622
      %v1655 = vmul.f32 %v1367, %v1623
      %v1656 = vmul.f32 %v1368, %v1624
      %v1657 = vmul.f32 %v1369, %v1625
      %v1658 = vmul.f32 %v1370, %v1626
      %v1659 = vmul.f32 %v1371, %v1627
      %v1660 = vmul.f32 %v1372, %v1628
      %v1661 = vmul.f32 %v1373, %v1629
      %v1662 = vmul.f32 %v1374, %v1630
      %v1663 = vmul.f32 %v1375, %v1631
      %v1664 = vmul.f32 %v1376, %v1632
      %v1665 = vmul.f32 %v1377, %v1633
      %v1666 = vmul.f32 %v1378, %v1634
      %v1667 = vmul.f32 %v1379, %v1635
      %v1668 = vmul.f32 %v1380, %v1636
      %v1669 = vmul.f32 %v1381, %v1637
      %v1670 = vmul.f32 %v1382, %v1638
      %v1671 = vmul.f32 %v1383, %v1639
      %v1672 = vmul.f32 %v1384, %v1640
      %v1673 = vld [vmem:[%s303] sm:$0x1]
      %v1675 = vlaneseq
      %v1676 = vshrl.u32 %v1675, 7
      %v1677 = vsub.s32 0, %v1676
      %v1678 = vrot.slane %v1673, %v1677
      %v1680 = vmul.f32 %v1641, %v1678
      %v1681 = vmul.f32 %v1642, %v1678
      %v1682 = vmul.f32 %v1643, %v1678
      %v1683 = vmul.f32 %v1644, %v1678
      %v1684 = vmul.f32 %v1645, %v1678
      %v1685 = vmul.f32 %v1646, %v1678
      %v1686 = vmul.f32 %v1647, %v1678
      %v1687 = vmul.f32 %v1648, %v1678
      %v1688 = vmul.f32 %v1649, %v1678
      %v1689 = vmul.f32 %v1650, %v1678
      %v1690 = vmul.f32 %v1651, %v1678
      %v1691 = vmul.f32 %v1652, %v1678
      %v1692 = vmul.f32 %v1653, %v1678
      %v1693 = vmul.f32 %v1654, %v1678
      %v1694 = vmul.f32 %v1655, %v1678
      %v1695 = vmul.f32 %v1656, %v1678
      %v1696 = vmul.f32 %v1657, %v1678
      %v1697 = vmul.f32 %v1658, %v1678
      %v1698 = vmul.f32 %v1659, %v1678
      %v1699 = vmul.f32 %v1660, %v1678
      %v1700 = vmul.f32 %v1661, %v1678
      %v1701 = vmul.f32 %v1662, %v1678
      %v1702 = vmul.f32 %v1663, %v1678
      %v1703 = vmul.f32 %v1664, %v1678
      %v1704 = vmul.f32 %v1665, %v1678
      %v1705 = vmul.f32 %v1666, %v1678
      %v1706 = vmul.f32 %v1667, %v1678
      %v1707 = vmul.f32 %v1668, %v1678
      %v1708 = vmul.f32 %v1669, %v1678
      %v1709 = vmul.f32 %v1670, %v1678
      %v1710 = vmul.f32 %v1671, %v1678
      %v1711 = vmul.f32 %v1672, %v1678
      %v1712 = vld [vmem:[%s306] sm:$0x1]
      %v1714 = vlaneseq
      %v1715 = vshrl.u32 %v1714, 7
      %v1716 = vsub.s32 0, %v1715
      %v1717 = vrot.slane %v1712, %v1716
      %v1719 = vadd.f32 %v1680, %v1717
      %v1720 = vadd.f32 %v1681, %v1717
      %v1721 = vadd.f32 %v1682, %v1717
      %v1722 = vadd.f32 %v1683, %v1717
      %v1723 = vadd.f32 %v1684, %v1717
      %v1724 = vadd.f32 %v1685, %v1717
      %v1725 = vadd.f32 %v1686, %v1717
      %v1726 = vadd.f32 %v1687, %v1717
      %v1727 = vadd.f32 %v1688, %v1717
      %v1728 = vadd.f32 %v1689, %v1717
      %v1729 = vadd.f32 %v1690, %v1717
      %v1730 = vadd.f32 %v1691, %v1717
      %v1731 = vadd.f32 %v1692, %v1717
      %v1732 = vadd.f32 %v1693, %v1717
      %v1733 = vadd.f32 %v1694, %v1717
      %v1734 = vadd.f32 %v1695, %v1717
      %v1735 = vadd.f32 %v1696, %v1717
      %v1736 = vadd.f32 %v1697, %v1717
      %v1737 = vadd.f32 %v1698, %v1717
      %v1738 = vadd.f32 %v1699, %v1717
      %v1739 = vadd.f32 %v1700, %v1717
      %v1740 = vadd.f32 %v1701, %v1717
      %v1741 = vadd.f32 %v1702, %v1717
      %v1742 = vadd.f32 %v1703, %v1717
      %v1743 = vadd.f32 %v1704, %v1717
      %v1744 = vadd.f32 %v1705, %v1717
      %v1745 = vadd.f32 %v1706, %v1717
      %v1746 = vadd.f32 %v1707, %v1717
      %v1747 = vadd.f32 %v1708, %v1717
      %v1748 = vadd.f32 %v1709, %v1717
      %v1749 = vadd.f32 %v1710, %v1717
      %v1750 = vadd.f32 %v1711, %v1717
      %v1751 = vadd.f32 %v1719, %v371
      %v1752 = vadd.f32 %v1720, %v372
      %v1753 = vadd.f32 %v1721, %v373
      %v1754 = vadd.f32 %v1722, %v374
      %v1755 = vadd.f32 %v1723, %v375
      %v1756 = vadd.f32 %v1724, %v376
      %v1757 = vadd.f32 %v1725, %v377
      %v1758 = vadd.f32 %v1726, %v378
      %v1759 = vadd.f32 %v1727, %v379
      %v1760 = vadd.f32 %v1728, %v380
      %v1761 = vadd.f32 %v1729, %v381
      %v1762 = vadd.f32 %v1730, %v382
      %v1763 = vadd.f32 %v1731, %v383
      %v1764 = vadd.f32 %v1732, %v384
      %v1765 = vadd.f32 %v1733, %v385
      %v1766 = vadd.f32 %v1734, %v386
      %v1767 = vadd.f32 %v1735, %v387
      %v1768 = vadd.f32 %v1736, %v388
      %v1769 = vadd.f32 %v1737, %v389
      %v1770 = vadd.f32 %v1738, %v390
      %v1771 = vadd.f32 %v1739, %v391
      %v1772 = vadd.f32 %v1740, %v392
      %v1773 = vadd.f32 %v1741, %v393
      %v1774 = vadd.f32 %v1742, %v394
      %v1775 = vadd.f32 %v1743, %v395
      %v1776 = vadd.f32 %v1744, %v396
      %v1777 = vadd.f32 %v1745, %v397
      %v1778 = vadd.f32 %v1746, %v398
      %v1779 = vadd.f32 %v1747, %v399
      %v1780 = vadd.f32 %v1748, %v400
      %v1781 = vadd.f32 %v1749, %v401
      %v1782 = vadd.f32 %v1750, %v402
      %1783 = vst.msk [vmem:[%s314] sm:$0xff] %vm315, %v1751
      %1784 = vst.msk [vmem:[%s314 + $0x8] sm:$0xff] %vm315, %v1752
      %1785 = vst.msk [vmem:[%s314 + $0x10] sm:$0xff] %vm315, %v1753
      %1786 = vst.msk [vmem:[%s314 + $0x18] sm:$0xff] %vm315, %v1754
      %1787 = vst.msk [vmem:[%s314 + $0x20] sm:$0xff] %vm315, %v1755
      %1788 = vst.msk [vmem:[%s314 + $0x28] sm:$0xff] %vm315, %v1756
      %1789 = vst.msk [vmem:[%s314 + $0x30] sm:$0xff] %vm315, %v1757
      %1790 = vst.msk [vmem:[%s314 + $0x38] sm:$0xff] %vm315, %v1758
      %1791 = vst.msk [vmem:[%s314 + $0x40] sm:$0xff] %vm315, %v1759
      %1792 = vst.msk [vmem:[%s314 + $0x48] sm:$0xff] %vm315, %v1760
      %1793 = vst.msk [vmem:[%s314 + $0x50] sm:$0xff] %vm315, %v1761
      %1794 = vst.msk [vmem:[%s314 + $0x58] sm:$0xff] %vm315, %v1762
      %1795 = vst.msk [vmem:[%s314 + $0x60] sm:$0xff] %vm315, %v1763
      %1796 = vst.msk [vmem:[%s314 + $0x68] sm:$0xff] %vm315, %v1764
      %1797 = vst.msk [vmem:[%s314 + $0x70] sm:$0xff] %vm315, %v1765
      %1798 = vst.msk [vmem:[%s314 + $0x78] sm:$0xff] %vm315, %v1766
      %1799 = vst.msk [vmem:[%s314 + $0x80] sm:$0xff] %vm315, %v1767
      %1800 = vst.msk [vmem:[%s314 + $0x88] sm:$0xff] %vm315, %v1768
      %1801 = vst.msk [vmem:[%s314 + $0x90] sm:$0xff] %vm315, %v1769
      %1802 = vst.msk [vmem:[%s314 + $0x98] sm:$0xff] %vm315, %v1770
      %1803 = vst.msk [vmem:[%s314 + $0xa0] sm:$0xff] %vm315, %v1771
      %1804 = vst.msk [vmem:[%s314 + $0xa8] sm:$0xff] %vm315, %v1772
      %1805 = vst.msk [vmem:[%s314 + $0xb0] sm:$0xff] %vm315, %v1773
      %1806 = vst.msk [vmem:[%s314 + $0xb8] sm:$0xff] %vm315, %v1774
      %1807 = vst.msk [vmem:[%s314 + $0xc0] sm:$0xff] %vm315, %v1775
      %1808 = vst.msk [vmem:[%s314 + $0xc8] sm:$0xff] %vm315, %v1776
      %1809 = vst.msk [vmem:[%s314 + $0xd0] sm:$0xff] %vm315, %v1777
      %1810 = vst.msk [vmem:[%s314 + $0xd8] sm:$0xff] %vm315, %v1778
      %1811 = vst.msk [vmem:[%s314 + $0xe0] sm:$0xff] %vm315, %v1779
      %1812 = vst.msk [vmem:[%s314 + $0xe8] sm:$0xff] %vm315, %v1780
      %1813 = vst.msk [vmem:[%s314 + $0xf0] sm:$0xff] %vm315, %v1781
      %1814 = vst.msk [vmem:[%s314 + $0xf8] sm:$0xff] %vm315, %v1782
      %p1815 = scmp.lt.s32.totalorder %s20, 1
      %s1816 = scalar_select %p1815, %s20, 1
      %p1817 = scmp.lt.s32.totalorder %s21, 0
      %s1818 = scalar_select %p1817, %s21, 0
      %s1819 = smul.addr %s1816, 32
      %s1820 = sadd.s32 %s1818, %s1819
      %s1821 = smul.addr %s1820, 8
      %s1822 = scalar_lea.vmem %s5, %s1821
      // Predicated region
      $region41: #{tpu_custom_call.1} parent=39 // pred_check
        %p1823 = pneg %p180
      $region42: #{tpu_custom_call.1} parent=39 // pred_check_branch
        %1825 = sbr.rel (%p1823) target = $region44
      $region43: #{tpu_custom_call.1} parent=39 // pred_region
        _
      $region44: #{tpu_custom_call.1} parent=39 // pred_fallthru
        _
    $region40: #{tpu_custom_call.1} parent=5 // pred_fallthru
      _
    %p1826 = scmp.le.s32.totalorder 2, %s11
    // Predicated region
    $region45: #{tpu_custom_call.1} parent=5 // pred_check
      %p1827 = pneg %p1826
    $region46: #{tpu_custom_call.1} parent=5 // pred_check_branch
      %1829 = sbr.rel (%p1827) target = $region48
    $region47: #{tpu_custom_call.1} parent=5 // pred_region
      %s1830 = ssub.s32 %s11, 2
      // Predicated region
      $region49: #{tpu_custom_call.1} parent=47 // pred_check
        %p1831 = pneg %p186
      $region50: #{tpu_custom_call.1} parent=47 // pred_check_branch
        %1833 = sbr.rel (%p1831) target = $region52
      $region51: #{tpu_custom_call.1} parent=47 // pred_region
        %p1834 = scmp.lt.s32.totalorder %s22, 1
        %s1835 = scalar_select %p1834, %s22, 1
        %p1836 = scmp.lt.s32.totalorder %s23, 0
        %s1837 = scalar_select %p1836, %s23, 0
        %s1838 = smul.addr %s1835, 32
        %s1839 = sadd.s32 %s1837, %s1838
        %s1840 = smul.addr %s1839, 8
        %s1841 = scalar_lea.vmem %s5, %s1840
      $region52: #{tpu_custom_call.1} parent=47 // pred_fallthru
        _
    $region48: #{tpu_custom_call.1} parent=5 // pred_fallthru
      _
  $region6: #{tpu_custom_call.1} parent=0 // loop_footer
    %s15 = sadd.s32 1, %s11
  $region7: #{tpu_custom_call.1} parent=0 // loop_footer_branch
    %10 = sbr.rel target = $region3
  $region8: #{tpu_custom_call.1} parent=0 // loop_exit
    _

</llo_original>
